<compile_context>
chip_gen: v5e
topology: v5e:2x2
jax: 0.10.0
libtpu: 0.0.40
codegen_flags: <defaults>
</compile_context>

<pallas_src>
import jax
import jax.numpy as jnp
from jax.experimental import pallas as pl
from jax.experimental.pallas import tpu as pltpu

# ---- model sizes (consistent with the module's defaults) ----
B = 8            # batch (number of envs)
FEAT = 32        # feature_dim (flattened obs [B, 2, 4, 4] -> 32)
ACT = 8          # action_dim
STATE = 32       # state_dim
H = 128          # lstm_hidden_dim
PH = 32          # policy_hidden_dim
VH = 32          # value_hidden_dim
RH = 32          # prediction_hidden_dim
G = 4 * H        # gates per LSTM cell (i, f, g, o)

# ---- packed 64-lane-wide weight slab row layout (all offsets % 16 == 0) ----
W64C = 64
R_W1 = 0                      # (2H, 64)  blockdiag(p_w1 -> cols 0:32, v_w1 -> cols 32:64)
R_W2 = 256                    # (64, 64)  blockdiag(p_w2, v_w2)
R_HEAD = 320                  # (64, 64)  blockdiag(p_wa -> cols 0:8, v_wv -> col 8)
R_RW1 = 384                   # (272, 64) r_w1 (264, 32) in cols 0:32 (+8 zero rows)
R_RW2 = 656                   # (64, 64)  r_w2 (32, 32) in top-left corner
R_RWP = 720                   # (64, 64)  r_wp (32, 33) in top-left corner
W64R = 784

# ---- packed bias row lane layout (offsets % 128 == 0) ----
OFF_BLSTM = 0                 # (1, 8H)  a_b | c_b   (b_ih + b_hh pre-folded)
OFF_B1 = 1024                 # p_b1 | v_b1
OFF_B2 = 1152                 # p_b2 | v_b2
OFF_BHEAD = 1280              # p_ba | v_bv | 0...
OFF_RB1 = 1408                # r_b1 | 0...
OFF_RB2 = 1536                # r_b2 | 0...
OFF_RBP = 1664                # r_bp | 0...
NB = 1792

# ---- packed per-step activation slab (T, B, 64): feat | u | 0 ----
XU_W = 64

# ---- packed main output lane layout (T, B, 128) ----
MAIN_W = 128
O_PROBS = 0                   # [0, ACT)
O_ACT = 8                     # action (stored as f32, exact for 0..ACT-1)
O_LP = 9                      # log_prob
O_ENT = 10                    # entropy
O_VAL = 11                    # value
O_SP = 16                     # [16, 16+STATE)  state_prediction
O_REW = O_SP + STATE          # reward_prediction (lane 48)


# ---------------------------------------------------------------------------
# kernel
# ---------------------------------------------------------------------------
def _policy_rollout_kernel(xu_ref, state0_ref, w_lstm_ref, w_hh_ref, w64_ref,
                           bias_ref, main_ref, state_ref):
    f32 = jnp.float32
    bf16 = jnp.bfloat16
    t = pl.program_id(0)

    # Recurrent carry lives in the VMEM-resident `state` output block
    # (constant index_map); seed it from the supplied initial state on step 0.
    @pl.when(t == 0)
    def _():
        state_ref[...] = state0_ref[...]

    xu = xu_ref[...]                                        # (B, 64) f32
    Bb = xu.shape[0]
    feat = xu[:, 0:FEAT].astype(bf16)                       # (B, FEAT)
    u = xu[:, FEAT:FEAT + 1]                                # (B, 1) uniform sample

    s_prev = state_ref[...]                                 # [h_a | c_a | h_c | c_c]
    h_a0 = s_prev[:, 0:H].astype(bf16)
    c_a0 = s_prev[:, H:2 * H]
    h_c0 = s_prev[:, 2 * H:3 * H].astype(bf16)
    c_c0 = s_prev[:, 3 * H:4 * H]

    # ---- fused LSTM input projection (actor + critic): one MXU launch ----
    gates = (jnp.dot(feat, w_lstm_ref[...], preferred_element_type=f32)
             + bias_ref[:, OFF_BLSTM:OFF_BLSTM + 2 * G])    # (B, 8H)
    # hidden projections: two independent K=128 dots (compact stacked w_hh)
    ga = gates[:, 0:G] + jnp.dot(h_a0, w_hh_ref[0:H, :], preferred_element_type=f32)
    gc = gates[:, G:2 * G] + jnp.dot(h_c0, w_hh_ref[H:2 * H, :], preferred_element_type=f32)

    def lstm_cell(g4, c0):
        i = jax.nn.sigmoid(g4[:, 0:H])
        f = jax.nn.sigmoid(g4[:, H:2 * H])
        g = jnp.tanh(g4[:, 2 * H:3 * H])
        o = jax.nn.sigmoid(g4[:, 3 * H:4 * H])
        c = f * c0 + i * g
        return o * jnp.tanh(c), c

    h_a, c_a = lstm_cell(ga, c_a0)
    h_c, c_c = lstm_cell(gc, c_c0)

    # write the carry (4 aligned 128-lane-wide stores, no masking)
    state_ref[:, 0:H] = h_a
    state_ref[:, H:2 * H] = c_a
    state_ref[:, 2 * H:3 * H] = h_c
    state_ref[:, 3 * H:4 * H] = c_c

    # ---- policy & value MLPs fused per layer via block-diagonal weights ----
    x1 = jnp.concatenate([h_a, h_c], axis=1).astype(bf16)                  # (B, 2H)
    pv1 = jnp.tanh(jnp.dot(x1, w64_ref[R_W1:R_W1 + 2 * H, :],
                           preferred_element_type=f32)
                   + bias_ref[:, OFF_B1:OFF_B1 + W64C])
    pv2 = jnp.tanh(jnp.dot(pv1.astype(bf16), w64_ref[R_W2:R_W2 + W64C, :],
                           preferred_element_type=f32)
                   + bias_ref[:, OFF_B2:OFF_B2 + W64C])
    head = (jnp.dot(pv2.astype(bf16), w64_ref[R_HEAD:R_HEAD + W64C, :],
                    preferred_element_type=f32)
            + bias_ref[:, OFF_BHEAD:OFF_BHEAD + W64C])                     # (B, 64)
    logits = head[:, 0:ACT]
    value = head[:, ACT:ACT + 1]

    # ---- softmax / sample / log_prob / entropy (f32, VPU + EUP only) ----
    m = jnp.max(logits, axis=-1, keepdims=True)
    z = logits - m
    ez = jnp.exp(z)
    denom = jnp.sum(ez, axis=-1, keepdims=True)
    probs = ez / denom
    log_probs = z - jnp.log(denom)

    # inverse-CDF categorical sample: running sum + compare (no MXU launch).
    # Counting only the first ACT-1 inclusive-cdf values clamps to ACT-1.
    run = probs[:, 0:1]
    action = (run < u).astype(jnp.int32)
    for k in range(1, ACT - 1):
        run = run + probs[:, k:k + 1]
        action = action + (run < u).astype(jnp.int32)

    lane16 = jax.lax.broadcasted_iota(jnp.int32, (Bb, 16), 1)
    onehot16 = (lane16 == action).astype(f32)               # one_hot padded to 16 lanes
    log_prob = jnp.sum(log_probs * onehot16[:, 0:ACT], axis=-1, keepdims=True)
    entropy = -jnp.sum(probs * log_probs, axis=-1, keepdims=True)

    # ---- PredictionNet: input = concat(h_a, h_c, one_hot(action)) ----
    pre = (jnp.dot(x1, w64_ref[R_RW1:R_RW1 + 2 * H, :], preferred_element_type=f32)
           + jnp.dot(onehot16.astype(bf16),
                     w64_ref[R_RW1 + 2 * H:R_RW1 + 2 * H + 16, :],
                     preferred_element_type=f32)
           + bias_ref[:, OFF_RB1:OFF_RB1 + W64C])
    y1 = jnp.tanh(pre)
    y2 = jnp.tanh(jnp.dot(y1.astype(bf16), w64_ref[R_RW2:R_RW2 + W64C, :],
                          preferred_element_type=f32)
                  + bias_ref[:, OFF_RB2:OFF_RB2 + W64C])
    pred = (jnp.dot(y2.astype(bf16), w64_ref[R_RWP:R_RWP + W64C, :],
                    preferred_element_type=f32)
            + bias_ref[:, OFF_RBP:OFF_RBP + W64C])                          # (B, 64)

    # ---- single lane-dense (B, 128) store of all narrow results ----
    main_ref[...] = jnp.concatenate(
        [probs,                                    # lanes [0, 8)
         action.astype(f32),                       # lane 8
         log_prob,                                 # lane 9
         entropy,                                  # lane 10
         value,                                    # lane 11
         jnp.zeros((Bb, 4), f32),                  # lanes [12, 16)
         pred,                                     # lanes [16, 80): state_pred | reward | 0
         jnp.zeros((Bb, MAIN_W - 16 - 64), f32)],  # lanes [80, 128)
        axis=1)


# ---------------------------------------------------------------------------
# wrapper
# ---------------------------------------------------------------------------
@jax.jit
def _run_rollout_kernel(packed, xu, state0):
    T, Bb, _ = xu.shape
    const2 = lambda t: (0, 0)
    out_shape = (jax.ShapeDtypeStruct((T, Bb, MAIN_W), jnp.float32),
                 jax.ShapeDtypeStruct((Bb, 4 * H), jnp.float32))
    return pl.pallas_call(
        _policy_rollout_kernel,
        grid=(T,),
        in_specs=[
            pl.BlockSpec((None, Bb, XU_W), lambda t: (t, 0, 0)),    # per-step feat|u
            pl.BlockSpec((Bb, 4 * H), const2),                      # initial state
            pl.BlockSpec(packed["w_lstm"].shape, const2),           # weights: resident
            pl.BlockSpec(packed["w_hh"].shape, const2),
            pl.BlockSpec(packed["w64"].shape, const2),
            pl.BlockSpec(packed["bias"].shape, const2),
        ],
        out_specs=(
            pl.BlockSpec((None, Bb, MAIN_W), lambda t: (t, 0, 0)),  # per-step results
            pl.BlockSpec((Bb, 4 * H), const2),                      # final state (carry)
        ),
        out_shape=out_shape,
        compiler_params=pltpu.CompilerParams(dimension_semantics=("arbitrary",)),
    )(xu, state0, packed["w_lstm"], packed["w_hh"], packed["w64"], packed["bias"])


def _pack_xu(obs_seq, u_seq):
    # FlattenExtractor: NCHW -> (T, B, feature_dim); pack feat + u in one slab.
    T, Bb = obs_seq.shape[0], obs_seq.shape[1]
    feat = obs_seq.reshape(T, Bb, -1).astype(jnp.float32)
    return jnp.concatenate(
        [feat, u_seq.astype(jnp.float32),
         jnp.zeros((T, Bb, XU_W - FEAT - 1), jnp.float32)], axis=-1)


def _pack_state(batch, states_actor, states_critic):
    zeros = jnp.zeros((batch, H), jnp.float32)
    h_a0, c_a0 = states_actor if states_actor is not None else (zeros, zeros)
    h_c0, c_c0 = states_critic if states_critic is not None else (zeros, zeros)
    return jnp.concatenate([h_a0, c_a0, h_c0, c_c0], axis=1)


def _unpack(main, state):
    action = main[..., O_ACT].astype(jnp.int32)
    policy = main[..., O_PROBS:O_PROBS + ACT]
    log_prob = main[..., O_LP]
    entropy = main[..., O_ENT]
    value = main[..., O_VAL:O_VAL + 1]
    state_pred = main[..., O_SP:O_SP + STATE]
    reward_pred = main[..., O_REW]
    h_a = state[:, 0:H]
    c_a = state[:, H:2 * H]
    h_c = state[:, 2 * H:3 * H]
    c_c = state[:, 3 * H:4 * H]
    return (action, policy, log_prob, entropy, value, state_pred, reward_pred,
            (h_a, c_a), (h_c, c_c))


def recurrent_actor_critic_forward(packed, obs, u, states_actor=None,
                                   states_critic=None):
    """One step of RecurrentActorCriticPolicy.forward (mask=None path)."""
    xu = _pack_xu(obs[None], u[None])
    state0 = _pack_state(obs.shape[0], states_actor, states_critic)
    main, state = _run_rollout_kernel(packed, xu, state0)
    return _unpack(main[0], state)


def recurrent_actor_critic_rollout(packed, obs_seq, u_seq, states_actor=None,
                                   states_critic=None):
    """T forward steps in a single pallas_call (weights stay VMEM-resident)."""
    xu = _pack_xu(obs_seq, u_seq)
    state0 = _pack_state(obs_seq.shape[1], states_actor, states_critic)
    main, state = _run_rollout_kernel(packed, xu, state0)
    return _unpack(main, state)   # per-step outputs, final recurrent states


# ---------------------------------------------------------------------------
# pure-JAX reference (same bf16-rounded weights / MXU feeds) for parity checks
# ---------------------------------------------------------------------------
def _reference_forward(packed, obs, states_actor=None, states_critic=None):
    f32 = jnp.float32

    def mm(x, w):   # emulate the kernel's bf16 MXU feed, f32 accumulation
        return jnp.dot(x.astype(jnp.bfloat16).astype(f32), w.astype(f32))

    feat = obs.reshape(obs.shape[0], -1).astype(f32)
    Bb = feat.shape[0]
    zeros = jnp.zeros((Bb, H), f32)
    h_a0, c_a0 = states_actor if states_actor is not None else (zeros, zeros)
    h_c0, c_c0 = states_critic if states_critic is not None else (zeros, zeros)

    bias = packed["bias"][0]
    w_lstm, w_hh, w64 = packed["w_lstm"], packed["w_hh"], packed["w64"]

    gates = mm(feat, w_lstm) + bias[OFF_BLSTM:OFF_BLSTM + 2 * G]
    ga = gates[:, 0:G] + mm(h_a0, w_hh[0:H])
    gc = gates[:, G:2 * G] + mm(h_c0, w_hh[H:2 * H])

    def cell(g4, c0):
        i = jax.nn.sigmoid(g4[:, 0:H])
        f = jax.nn.sigmoid(g4[:, H:2 * H])
        g = jnp.tanh(g4[:, 2 * H:3 * H])
        o = jax.nn.sigmoid(g4[:, 3 * H:4 * H])
        c = f * c0 + i * g
        return o * jnp.tanh(c), c

    h_a, c_a = cell(ga, c_a0)
    h_c, c_c = cell(gc, c_c0)

    x1 = jnp.concatenate([h_a, h_c], axis=1)
    pv1 = jnp.tanh(mm(x1, w64[R_W1:R_W1 + 2 * H]) + bias[OFF_B1:OFF_B1 + W64C])
    pv2 = jnp.tanh(mm(pv1, w64[R_W2:R_W2 + W64C]) + bias[OFF_B2:OFF_B2 + W64C])
    head = mm(pv2, w64[R_HEAD:R_HEAD + W64C]) + bias[OFF_BHEAD:OFF_BHEAD + W64C]
    logits = head[:, 0:ACT]
    value = head[:, ACT:ACT + 1]
    z = logits - jnp.max(logits, axis=-1, keepdims=True)
    ez = jnp.exp(z)
    probs = ez / jnp.sum(ez, axis=-1, keepdims=True)
    log_probs = z - jnp.log(jnp.sum(ez, axis=-1, keepdims=True))
    entropy = -jnp.sum(probs * log_probs, axis=-1)
    return probs, value, entropy, h_a, c_a, h_c, c_c


# ---------------------------------------------------------------------------
# parameter init (PyTorch-style uniform bounds) + packing into kernel slabs
# ---------------------------------------------------------------------------
def _linear(key, in_dim, out_dim):
    k1, k2 = jax.random.split(key)
    bound = 1.0 / (in_dim ** 0.5)
    w = jax.random.uniform(k1, (in_dim, out_dim), jnp.float32, -bound, bound)
    b = jax.random.uniform(k2, (1, out_dim), jnp.float32, -bound, bound)
    return w, b


def init_params(key):
    keys = jax.random.split(key, 16)
    p = {}
    # LSTM actor / critic.  NOTE: a_b / c_b are b_ih + b_hh pre-folded into one
    # (1, 4H) vector (must be folded when importing real PyTorch weights).
    bnd = 1.0 / (H ** 0.5)
    p["a_wih"] = jax.random.uniform(keys[0], (FEAT, 4 * H), jnp.float32, -bnd, bnd)
    p["a_whh"] = jax.random.uniform(keys[1], (H, 4 * H), jnp.float32, -bnd, bnd)
    p["a_b"] = jax.random.uniform(keys[2], (1, 4 * H), jnp.float32, -bnd, bnd)
    p["c_wih"] = jax.random.uniform(keys[3], (FEAT, 4 * H), jnp.float32, -bnd, bnd)
    p["c_whh"] = jax.random.uniform(keys[4], (H, 4 * H), jnp.float32, -bnd, bnd)
    p["c_b"] = jax.random.uniform(keys[5], (1, 4 * H), jnp.float32, -bnd, bnd)
    # policy net (MlpExtractor + fc_action)
    p["p_w1"], p["p_b1"] = _linear(keys[6], H, PH)
    p["p_w2"], p["p_b2"] = _linear(keys[7], PH, PH)
    p["p_wa"], p["p_ba"] = _linear(keys[8], PH, ACT)
    # value net
    p["v_w1"], p["v_b1"] = _linear(keys[9], H, VH)
    p["v_w2"], p["v_b2"] = _linear(keys[10], VH, VH)
    p["v_wv"], p["v_bv"] = _linear(keys[11], VH, 1)
    # prediction net (input = 2*H + ACT)
    p["r_w1"], p["r_b1"] = _linear(keys[12], 2 * H + ACT, RH)
    p["r_w2"], p["r_b2"] = _linear(keys[13], RH, RH)
    p["r_wp"], p["r_bp"] = _linear(keys[14], RH, STATE + 1)
    return p


def pack_params(p):
    """Pack per-layer params into the contiguous slabs the kernel expects."""
    f32 = jnp.float32
    bf16 = jnp.bfloat16

    # fused LSTM input projection:  gates = feat @ [a_wih | c_wih]
    w_lstm = jnp.concatenate([p["a_wih"], p["c_wih"]], axis=1).astype(bf16)

    # compact stacked LSTM hidden projection: rows 0:H -> actor, H:2H -> critic
    w_hh = jnp.concatenate([p["a_whh"], p["c_whh"]], axis=0).astype(bf16)

    # 64-lane-wide slab holding every other weight (block-diagonal / padded)
    w64 = jnp.zeros((W64R, W64C), f32)
    w64 = w64.at[R_W1:R_W1 + H, 0:PH].set(p["p_w1"])
    w64 = w64.at[R_W1 + H:R_W1 + 2 * H, PH:PH + VH].set(p["v_w1"])
    w64 = w64.at[R_W2:R_W2 + PH, 0:PH].set(p["p_w2"])
    w64 = w64.at[R_W2 + PH:R_W2 + PH + VH, PH:PH + VH].set(p["v_w2"])
    w64 = w64.at[R_HEAD:R_HEAD + PH, 0:ACT].set(p["p_wa"])
    w64 = w64.at[R_HEAD + PH:R_HEAD + PH + VH, ACT:ACT + 1].set(p["v_wv"])
    w64 = w64.at[R_RW1:R_RW1 + 2 * H + ACT, 0:RH].set(p["r_w1"])
    w64 = w64.at[R_RW2:R_RW2 + RH, 0:RH].set(p["r_w2"])
    w64 = w64.at[R_RWP:R_RWP + RH, 0:STATE + 1].set(p["r_wp"])
    w64 = w64.astype(bf16)

    # one bias row, each section at a 128-lane-aligned offset (kept f32)
    bias = jnp.zeros((1, NB), f32)
    bias = bias.at[:, OFF_BLSTM:OFF_BLSTM + G].set(p["a_b"])
    bias = bias.at[:, OFF_BLSTM + G:OFF_BLSTM + 2 * G].set(p["c_b"])
    bias = bias.at[:, OFF_B1:OFF_B1 + PH].set(p["p_b1"])
    bias = bias.at[:, OFF_B1 + PH:OFF_B1 + PH + VH].set(p["v_b1"])
    bias = bias.at[:, OFF_B2:OFF_B2 + PH].set(p["p_b2"])
    bias = bias.at[:, OFF_B2 + PH:OFF_B2 + PH + VH].set(p["v_b2"])
    bias = bias.at[:, OFF_BHEAD:OFF_BHEAD + ACT].set(p["p_ba"])
    bias = bias.at[:, OFF_BHEAD + ACT:OFF_BHEAD + ACT + 1].set(p["v_bv"])
    bias = bias.at[:, OFF_RB1:OFF_RB1 + RH].set(p["r_b1"])
    bias = bias.at[:, OFF_RB2:OFF_RB2 + RH].set(p["r_b2"])
    bias = bias.at[:, OFF_RBP:OFF_RBP + STATE + 1].set(p["r_bp"])

    return {"w_lstm": w_lstm, "w_hh": w_hh, "w64": w64, "bias": bias}


if __name__ == "__main__":
    key = jax.random.PRNGKey(0)
    k_param, k_obs, k_u, k_obs_seq, k_u_seq = jax.random.split(key, 5)

    params = init_params(k_param)
    packed = pack_params(params)

    # obs in NCHW: [B, 2, 4, 4] -> flattened feature_dim = 32
    obs = jax.random.normal(k_obs, (B, 2, 4, 4), jnp.float32)
    # one uniform per batch row for categorical sampling (torch RNG replaced)
    u = jax.random.uniform(k_u, (B, 1), jnp.float32)

    # ---- step 1: forward(obs, None, None)  (zero initial states) ----
    outs = jax.block_until_ready(recurrent_actor_critic_forward(packed, obs, u))
    (action, policy, log_prob, entropy, value,
     state_pred, reward_pred, (h_a, c_a), (h_c, c_c)) = outs

    assert action.shape == (B,) and action.dtype == jnp.int32
    assert policy.shape == (B, ACT)
    assert log_prob.shape == (B,) and entropy.shape == (B,)
    assert value.shape == (B, 1)
    assert state_pred.shape == (B, STATE) and reward_pred.shape == (B,)
    assert h_a.shape == (B, H) and c_a.shape == (B, H)
    assert h_c.shape == (B, H) and c_c.shape == (B, H)
    assert bool(jnp.all(action >= 0)) and bool(jnp.all(action < ACT))
    assert jnp.allclose(jnp.sum(policy, axis=-1), 1.0, atol=1e-5)

    # parity vs. pure-JAX reference (loose: bf16 MXU feeds)
    ref_probs, ref_value, ref_ent, ref_ha, ref_ca, ref_hc, ref_cc = \
        _reference_forward(packed, obs)
    assert jnp.allclose(policy, ref_probs, atol=2e-2)
    assert jnp.allclose(value, ref_value, atol=2e-2)
    assert jnp.allclose(entropy, ref_ent, atol=2e-2)
    assert jnp.allclose(h_a, ref_ha, atol=2e-2) and jnp.allclose(c_a, ref_ca, atol=2e-2)
    assert jnp.allclose(h_c, ref_hc, atol=2e-2) and jnp.allclose(c_c, ref_cc, atol=2e-2)

    # ---- step 2: one recurrent step feeding the states back in ----
    outs2 = jax.block_until_ready(recurrent_actor_critic_forward(
        packed, obs, u, states_actor=(h_a, c_a), states_critic=(h_c, c_c)))
    assert outs2[0].shape == (B,)
    assert outs2[1].shape == (B, ACT)
    assert jnp.allclose(jnp.sum(outs2[1], axis=-1), 1.0, atol=1e-5)

    # ---- step 3: T-step rollout in a single pallas_call (weights resident) ----
    T = 8
    obs_seq = jax.random.normal(k_obs_seq, (T, B, 2, 4, 4), jnp.float32)
    u_seq = jax.random.uniform(k_u_seq, (T, B, 1), jnp.float32)
    r_outs = jax.block_until_ready(
        recurrent_actor_critic_rollout(packed, obs_seq, u_seq))
    (r_action, r_policy, r_lp, r_ent, r_val, r_sp, r_rp,
     (rh_a, rc_a), (rh_c, rc_c)) = r_outs
    assert r_action.shape == (T, B) and r_policy.shape == (T, B, ACT)
    assert r_val.shape == (T, B, 1) and r_sp.shape == (T, B, STATE)
    assert rh_a.shape == (B, H) and rc_c.shape == (B, H)
    assert jnp.allclose(jnp.sum(r_policy, axis=-1), 1.0, atol=1e-5)

    # cross-check the time-grid rollout against T sequential single-step calls
    s_a, s_c = None, None
    for t in range(T):
        step = recurrent_actor_critic_forward(packed, obs_seq[t], u_seq[t],
                                              states_actor=s_a, states_critic=s_c)
        s_a, s_c = step[7], step[8]
        assert jnp.allclose(step[1], r_policy[t], atol=1e-5)
    assert jnp.allclose(s_a[0], rh_a, atol=1e-5) and jnp.allclose(s_a[1], rc_a, atol=1e-5)
    assert jnp.allclose(s_c[0], rh_c, atol=1e-5) and jnp.allclose(s_c[1], rc_c, atol=1e-5)

    print("KERNEL_OK")
</pallas_src>

<mosaic_0001>
module attributes {stable_mosaic.version = 11 : i64} {
  func.func @_policy_rollout_kernel(%arg0: i32, %arg1: memref<1x8x64xf32, #tpu.memory_space<vmem>>, %arg2: memref<8x512xf32, #tpu.memory_space<vmem>>, %arg3: memref<32x1024xbf16, #tpu.memory_space<vmem>>, %arg4: memref<256x512xbf16, #tpu.memory_space<vmem>>, %arg5: memref<784x64xbf16, #tpu.memory_space<vmem>>, %arg6: memref<1x1792xf32, #tpu.memory_space<vmem>>, %arg7: memref<1x8x128xf32, #tpu.memory_space<vmem>>, %arg8: memref<8x512xf32, #tpu.memory_space<vmem>>) attributes {dimension_semantics = [#tpu.dimension_semantics<arbitrary>], iteration_bounds = array<i64: 1>, scalar_prefetch = 0 : i64, scratch_operands = 0 : i64, tpu.core_type = #tpu.core_type<tc>, window_params = [{transform_indices = @transform_0, window_bounds = array<i64: 1, 8, 64>}, {pipeline_mode = #tpu.pipeline_mode<synchronous>, transform_indices = @transform_1, window_bounds = array<i64: 8, 512>}, {pipeline_mode = #tpu.pipeline_mode<synchronous>, transform_indices = @transform_2, window_bounds = array<i64: 32, 1024>}, {pipeline_mode = #tpu.pipeline_mode<synchronous>, transform_indices = @transform_3, window_bounds = array<i64: 256, 512>}, {pipeline_mode = #tpu.pipeline_mode<synchronous>, transform_indices = @transform_4, window_bounds = array<i64: 784, 64>}, {pipeline_mode = #tpu.pipeline_mode<synchronous>, transform_indices = @transform_5, window_bounds = array<i64: 1, 1792>}, {transform_indices = @transform_6, window_bounds = array<i64: 1, 8, 128>}, {pipeline_mode = #tpu.pipeline_mode<synchronous>, transform_indices = @transform_7, window_bounds = array<i64: 8, 512>}]} {
    %c0_i32 = arith.constant 0 : i32
    %0 = arith.cmpi eq, %arg0, %c0_i32 : i32
    %1 = arith.extui %0 : i1 to i32
    %c0_i32_0 = arith.constant 0 : i32
    %2 = arith.cmpi ne, %1, %c0_i32_0 : i32
    scf.if %2 {
      %c0_59 = arith.constant 0 : index
      %c0_60 = arith.constant 0 : index
      %194 = vector.load %arg2[%c0_59, %c0_60] : memref<8x512xf32, #tpu.memory_space<vmem>>, vector<8x512xf32>
      %c0_61 = arith.constant 0 : index
      %c0_62 = arith.constant 0 : index
      %195 = vector.load %arg8[%c0_61, %c0_62] : memref<8x512xf32, #tpu.memory_space<vmem>>, vector<8x512xf32>
      tpu.vector_store %arg8[%c0_61, %c0_62], %194 {strides = array<i32>} : memref<8x512xf32, #tpu.memory_space<vmem>>, vector<8x512xf32>,
    } else {
    }
    %c0 = arith.constant 0 : index
    %c0_1 = arith.constant 0 : index
    %c0_2 = arith.constant 0 : index
    %3 = vector.load %arg1[%c0, %c0_1, %c0_2] : memref<1x8x64xf32, #tpu.memory_space<vmem>>, vector<1x8x64xf32>
    %4 = vector.shape_cast %3 : vector<1x8x64xf32> to vector<8x64xf32>
    %5 = vector.extract_strided_slice %4 {offsets = [0, 0], sizes = [8, 32], strides = [1, 1]} : vector<8x64xf32> to vector<8x32xf32>
    %6 = arith.truncf %5 : vector<8x32xf32> to vector<8x32xbf16>
    %7 = vector.extract_strided_slice %4 {offsets = [0, 32], sizes = [8, 1], strides = [1, 1]} : vector<8x64xf32> to vector<8x1xf32>
    %c0_3 = arith.constant 0 : index
    %c0_4 = arith.constant 0 : index
    %8 = vector.load %arg8[%c0_3, %c0_4] : memref<8x512xf32, #tpu.memory_space<vmem>>, vector<8x512xf32>
    %9 = vector.extract_strided_slice %8 {offsets = [0, 0], sizes = [8, 128], strides = [1, 1]} : vector<8x512xf32> to vector<8x128xf32>
    %10 = arith.truncf %9 : vector<8x128xf32> to vector<8x128xbf16>
    %11 = vector.extract_strided_slice %8 {offsets = [0, 128], sizes = [8, 128], strides = [1, 1]} : vector<8x512xf32> to vector<8x128xf32>
    %12 = vector.extract_strided_slice %8 {offsets = [0, 256], sizes = [8, 128], strides = [1, 1]} : vector<8x512xf32> to vector<8x128xf32>
    %13 = arith.truncf %12 : vector<8x128xf32> to vector<8x128xbf16>
    %14 = vector.extract_strided_slice %8 {offsets = [0, 384], sizes = [8, 128], strides = [1, 1]} : vector<8x512xf32> to vector<8x128xf32>
    %c0_5 = arith.constant 0 : index
    %c0_6 = arith.constant 0 : index
    %15 = vector.load %arg3[%c0_5, %c0_6] : memref<32x1024xbf16, #tpu.memory_space<vmem>>, vector<32x1024xbf16>
    %cst = arith.constant dense<0.000000e+00> : vector<8x1024xf32>
    %16 = tpu.matmul %6, %15, %cst {dimension_numbers = #tpu.dot_dimension_numbers<[1], [0], [0], [1], [0, 0, 1, 1], [], []>} : vector<8x32xbf16>, vector<32x1024xbf16>, vector<8x1024xf32> -> vector<8x1024xf32>
    %c0_7 = arith.constant 0 : index
    %c0_8 = arith.constant 0 : index
    %17 = vector.load %arg6[%c0_7, %c0_8] : memref<1x1792xf32, #tpu.memory_space<vmem>>, vector<1x1024xf32>
    %18 = vector.broadcast %17 : vector<1x1024xf32> to vector<8x1024xf32>
    %19 = arith.addf %16, %18 : vector<8x1024xf32>
    %20 = vector.extract_strided_slice %19 {offsets = [0, 0], sizes = [8, 512], strides = [1, 1]} : vector<8x1024xf32> to vector<8x512xf32>
    %c0_9 = arith.constant 0 : index
    %c0_10 = arith.constant 0 : index
    %21 = vector.load %arg4[%c0_9, %c0_10] : memref<256x512xbf16, #tpu.memory_space<vmem>>, vector<128x512xbf16>
    %cst_11 = arith.constant dense<0.000000e+00> : vector<8x512xf32>
    %22 = tpu.matmul %10, %21, %cst_11 {dimension_numbers = #tpu.dot_dimension_numbers<[1], [0], [0], [1], [0, 0, 1, 1], [], []>} : vector<8x128xbf16>, vector<128x512xbf16>, vector<8x512xf32> -> vector<8x512xf32>
    %23 = arith.addf %20, %22 : vector<8x512xf32>
    %24 = vector.extract_strided_slice %19 {offsets = [0, 512], sizes = [8, 512], strides = [1, 1]} : vector<8x1024xf32> to vector<8x512xf32>
    %c128 = arith.constant 128 : index
    %c0_12 = arith.constant 0 : index
    %25 = vector.load %arg4[%c128, %c0_12] : memref<256x512xbf16, #tpu.memory_space<vmem>>, vector<128x512xbf16>
    %cst_13 = arith.constant dense<0.000000e+00> : vector<8x512xf32>
    %26 = tpu.matmul %13, %25, %cst_13 {dimension_numbers = #tpu.dot_dimension_numbers<[1], [0], [0], [1], [0, 0, 1, 1], [], []>} : vector<8x128xbf16>, vector<128x512xbf16>, vector<8x512xf32> -> vector<8x512xf32>
    %27 = arith.addf %24, %26 : vector<8x512xf32>
    %28 = vector.extract_strided_slice %23 {offsets = [0, 0], sizes = [8, 128], strides = [1, 1]} : vector<8x512xf32> to vector<8x128xf32>
    %29 = arith.negf %28 : vector<8x128xf32>
    %30 = math.exp %29 : vector<8x128xf32>
    %cst_14 = arith.constant 1.000000e+00 : f32
    %31 = vector.broadcast %cst_14 : f32 to vector<8x128xf32>
    %32 = arith.addf %31, %30 : vector<8x128xf32>
    %33 = arith.divf %31, %32 : vector<8x128xf32>
    %34 = vector.extract_strided_slice %23 {offsets = [0, 128], sizes = [8, 128], strides = [1, 1]} : vector<8x512xf32> to vector<8x128xf32>
    %35 = arith.negf %34 : vector<8x128xf32>
    %36 = math.exp %35 : vector<8x128xf32>
    %cst_15 = arith.constant 1.000000e+00 : f32
    %37 = vector.broadcast %cst_15 : f32 to vector<8x128xf32>
    %38 = arith.addf %37, %36 : vector<8x128xf32>
    %39 = arith.divf %37, %38 : vector<8x128xf32>
    %40 = vector.extract_strided_slice %23 {offsets = [0, 256], sizes = [8, 128], strides = [1, 1]} : vector<8x512xf32> to vector<8x128xf32>
    %41 = math.tanh %40 : vector<8x128xf32>
    %42 = vector.extract_strided_slice %23 {offsets = [0, 384], sizes = [8, 128], strides = [1, 1]} : vector<8x512xf32> to vector<8x128xf32>
    %43 = arith.negf %42 : vector<8x128xf32>
    %44 = math.exp %43 : vector<8x128xf32>
    %cst_16 = arith.constant 1.000000e+00 : f32
    %45 = vector.broadcast %cst_16 : f32 to vector<8x128xf32>
    %46 = arith.addf %45, %44 : vector<8x128xf32>
    %47 = arith.divf %45, %46 : vector<8x128xf32>
    %48 = arith.mulf %39, %11 : vector<8x128xf32>
    %49 = arith.mulf %33, %41 : vector<8x128xf32>
    %50 = arith.addf %48, %49 : vector<8x128xf32>
    %51 = math.tanh %50 : vector<8x128xf32>
    %52 = arith.mulf %47, %51 : vector<8x128xf32>
    %53 = vector.extract_strided_slice %27 {offsets = [0, 0], sizes = [8, 128], strides = [1, 1]} : vector<8x512xf32> to vector<8x128xf32>
    %54 = arith.negf %53 : vector<8x128xf32>
    %55 = math.exp %54 : vector<8x128xf32>
    %cst_17 = arith.constant 1.000000e+00 : f32
    %56 = vector.broadcast %cst_17 : f32 to vector<8x128xf32>
    %57 = arith.addf %56, %55 : vector<8x128xf32>
    %58 = arith.divf %56, %57 : vector<8x128xf32>
    %59 = vector.extract_strided_slice %27 {offsets = [0, 128], sizes = [8, 128], strides = [1, 1]} : vector<8x512xf32> to vector<8x128xf32>
    %60 = arith.negf %59 : vector<8x128xf32>
    %61 = math.exp %60 : vector<8x128xf32>
    %cst_18 = arith.constant 1.000000e+00 : f32
    %62 = vector.broadcast %cst_18 : f32 to vector<8x128xf32>
    %63 = arith.addf %62, %61 : vector<8x128xf32>
    %64 = arith.divf %62, %63 : vector<8x128xf32>
    %65 = vector.extract_strided_slice %27 {offsets = [0, 256], sizes = [8, 128], strides = [1, 1]} : vector<8x512xf32> to vector<8x128xf32>
    %66 = math.tanh %65 : vector<8x128xf32>
    %67 = vector.extract_strided_slice %27 {offsets = [0, 384], sizes = [8, 128], strides = [1, 1]} : vector<8x512xf32> to vector<8x128xf32>
    %68 = arith.negf %67 : vector<8x128xf32>
    %69 = math.exp %68 : vector<8x128xf32>
    %cst_19 = arith.constant 1.000000e+00 : f32
    %70 = vector.broadcast %cst_19 : f32 to vector<8x128xf32>
    %71 = arith.addf %70, %69 : vector<8x128xf32>
    %72 = arith.divf %70, %71 : vector<8x128xf32>
    %73 = arith.mulf %64, %14 : vector<8x128xf32>
    %74 = arith.mulf %58, %66 : vector<8x128xf32>
    %75 = arith.addf %73, %74 : vector<8x128xf32>
    %76 = math.tanh %75 : vector<8x128xf32>
    %77 = arith.mulf %72, %76 : vector<8x128xf32>
    %c0_20 = arith.constant 0 : index
    %c0_21 = arith.constant 0 : index
    %78 = vector.load %arg8[%c0_20, %c0_21] : memref<8x512xf32, #tpu.memory_space<vmem>>, vector<8x128xf32>
    tpu.vector_store %arg8[%c0_20, %c0_21], %52 {strides = array<i32>} : memref<8x512xf32, #tpu.memory_space<vmem>>, vector<8x128xf32>,
    %c0_22 = arith.constant 0 : index
    %c128_23 = arith.constant 128 : index
    %79 = vector.load %arg8[%c0_22, %c128_23] : memref<8x512xf32, #tpu.memory_space<vmem>>, vector<8x128xf32>
    tpu.vector_store %arg8[%c0_22, %c128_23], %50 {strides = array<i32>} : memref<8x512xf32, #tpu.memory_space<vmem>>, vector<8x128xf32>,
    %c0_24 = arith.constant 0 : index
    %c256 = arith.constant 256 : index
    %80 = vector.load %arg8[%c0_24, %c256] : memref<8x512xf32, #tpu.memory_space<vmem>>, vector<8x128xf32>
    tpu.vector_store %arg8[%c0_24, %c256], %77 {strides = array<i32>} : memref<8x512xf32, #tpu.memory_space<vmem>>, vector<8x128xf32>,
    %c0_25 = arith.constant 0 : index
    %c384 = arith.constant 384 : index
    %81 = vector.load %arg8[%c0_25, %c384] : memref<8x512xf32, #tpu.memory_space<vmem>>, vector<8x128xf32>
    tpu.vector_store %arg8[%c0_25, %c384], %75 {strides = array<i32>} : memref<8x512xf32, #tpu.memory_space<vmem>>, vector<8x128xf32>,
    %82 = tpu.concatenate %52, %77 in 1 : vector<8x128xf32>, vector<8x128xf32> -> vector<8x256xf32>
    %83 = arith.truncf %82 : vector<8x256xf32> to vector<8x256xbf16>
    %c0_26 = arith.constant 0 : index
    %c0_27 = arith.constant 0 : index
    %84 = vector.load %arg5[%c0_26, %c0_27] : memref<784x64xbf16, #tpu.memory_space<vmem>>, vector<256x64xbf16>
    %cst_28 = arith.constant dense<0.000000e+00> : vector<8x64xf32>
    %85 = tpu.matmul %83, %84, %cst_28 {dimension_numbers = #tpu.dot_dimension_numbers<[1], [0], [0], [1], [0, 0, 1, 1], [], []>} : vector<8x256xbf16>, vector<256x64xbf16>, vector<8x64xf32> -> vector<8x64xf32>
    %c0_29 = arith.constant 0 : index
    %c1024 = arith.constant 1024 : index
    %86 = vector.load %arg6[%c0_29, %c1024] : memref<1x1792xf32, #tpu.memory_space<vmem>>, vector<1x64xf32>
    %87 = vector.broadcast %86 : vector<1x64xf32> to vector<8x64xf32>
    %88 = arith.addf %85, %87 : vector<8x64xf32>
    %89 = math.tanh %88 : vector<8x64xf32>
    %90 = arith.truncf %89 : vector<8x64xf32> to vector<8x64xbf16>
    %c256_30 = arith.constant 256 : index
    %c0_31 = arith.constant 0 : index
    %91 = vector.load %arg5[%c256_30, %c0_31] : memref<784x64xbf16, #tpu.memory_space<vmem>>, vector<64x64xbf16>
    %cst_32 = arith.constant dense<0.000000e+00> : vector<8x64xf32>
    %92 = tpu.matmul %90, %91, %cst_32 {dimension_numbers = #tpu.dot_dimension_numbers<[1], [0], [0], [1], [0, 0, 1, 1], [], []>} : vector<8x64xbf16>, vector<64x64xbf16>, vector<8x64xf32> -> vector<8x64xf32>
    %c0_33 = arith.constant 0 : index
    %c1152 = arith.constant 1152 : index
    %93 = vector.load %arg6[%c0_33, %c1152] : memref<1x1792xf32, #tpu.memory_space<vmem>>, vector<1x64xf32>
    %94 = vector.broadcast %93 : vector<1x64xf32> to vector<8x64xf32>
    %95 = arith.addf %92, %94 : vector<8x64xf32>
    %96 = math.tanh %95 : vector<8x64xf32>
    %97 = arith.truncf %96 : vector<8x64xf32> to vector<8x64xbf16>
    %c320 = arith.constant 320 : index
    %c0_34 = arith.constant 0 : index
    %98 = vector.load %arg5[%c320, %c0_34] : memref<784x64xbf16, #tpu.memory_space<vmem>>, vector<64x64xbf16>
    %cst_35 = arith.constant dense<0.000000e+00> : vector<8x64xf32>
    %99 = tpu.matmul %97, %98, %cst_35 {dimension_numbers = #tpu.dot_dimension_numbers<[1], [0], [0], [1], [0, 0, 1, 1], [], []>} : vector<8x64xbf16>, vector<64x64xbf16>, vector<8x64xf32> -> vector<8x64xf32>
    %c0_36 = arith.constant 0 : index
    %c1280 = arith.constant 1280 : index
    %100 = vector.load %arg6[%c0_36, %c1280] : memref<1x1792xf32, #tpu.memory_space<vmem>>, vector<1x64xf32>
    %101 = vector.broadcast %100 : vector<1x64xf32> to vector<8x64xf32>
    %102 = arith.addf %99, %101 : vector<8x64xf32>
    %103 = vector.extract_strided_slice %102 {offsets = [0, 0], sizes = [8, 8], strides = [1, 1]} : vector<8x64xf32> to vector<8x8xf32>
    %104 = vector.extract_strided_slice %102 {offsets = [0, 8], sizes = [8, 1], strides = [1, 1]} : vector<8x64xf32> to vector<8x1xf32>
    %cst_37 = arith.constant dense<0xFF800000> : vector<8xf32>
    %105 = vector.multi_reduction <maximumf>, %103, %cst_37 [1] : vector<8x8xf32> to vector<8xf32>
    %106 = vector.shape_cast %105 : vector<8xf32> to vector<8x1xf32>
    %107 = vector.broadcast %106 : vector<8x1xf32> to vector<8x8xf32>
    %108 = arith.subf %103, %107 : vector<8x8xf32>
    %109 = math.exp %108 : vector<8x8xf32>
    %cst_38 = arith.constant dense<0.000000e+00> : vector<8xf32>
    %110 = vector.multi_reduction <add>, %109, %cst_38 [1] : vector<8x8xf32> to vector<8xf32>
    %111 = vector.shape_cast %110 : vector<8xf32> to vector<8x1xf32>
    %112 = vector.broadcast %111 : vector<8x1xf32> to vector<8x8xf32>
    %113 = arith.divf %109, %112 : vector<8x8xf32>
    %114 = math.log %111 : vector<8x1xf32>
    %115 = vector.broadcast %114 : vector<8x1xf32> to vector<8x8xf32>
    %116 = arith.subf %108, %115 : vector<8x8xf32>
    %117 = vector.extract_strided_slice %113 {offsets = [0, 0], sizes = [8, 1], strides = [1, 1]} : vector<8x8xf32> to vector<8x1xf32>
    %118 = arith.cmpf olt, %117, %7 : vector<8x1xf32>
    %119 = arith.extui %118 : vector<8x1xi1> to vector<8x1xi32>
    %120 = vector.extract_strided_slice %113 {offsets = [0, 1], sizes = [8, 1], strides = [1, 1]} : vector<8x8xf32> to vector<8x1xf32>
    %121 = arith.addf %117, %120 : vector<8x1xf32>
    %122 = arith.cmpf olt, %121, %7 : vector<8x1xf32>
    %123 = arith.extui %122 : vector<8x1xi1> to vector<8x1xi32>
    %124 = arith.addi %119, %123 : vector<8x1xi32>
    %125 = vector.extract_strided_slice %113 {offsets = [0, 2], sizes = [8, 1], strides = [1, 1]} : vector<8x8xf32> to vector<8x1xf32>
    %126 = arith.addf %121, %125 : vector<8x1xf32>
    %127 = arith.cmpf olt, %126, %7 : vector<8x1xf32>
    %128 = arith.extui %127 : vector<8x1xi1> to vector<8x1xi32>
    %129 = arith.addi %124, %128 : vector<8x1xi32>
    %130 = vector.extract_strided_slice %113 {offsets = [0, 3], sizes = [8, 1], strides = [1, 1]} : vector<8x8xf32> to vector<8x1xf32>
    %131 = arith.addf %126, %130 : vector<8x1xf32>
    %132 = arith.cmpf olt, %131, %7 : vector<8x1xf32>
    %133 = arith.extui %132 : vector<8x1xi1> to vector<8x1xi32>
    %134 = arith.addi %129, %133 : vector<8x1xi32>
    %135 = vector.extract_strided_slice %113 {offsets = [0, 4], sizes = [8, 1], strides = [1, 1]} : vector<8x8xf32> to vector<8x1xf32>
    %136 = arith.addf %131, %135 : vector<8x1xf32>
    %137 = arith.cmpf olt, %136, %7 : vector<8x1xf32>
    %138 = arith.extui %137 : vector<8x1xi1> to vector<8x1xi32>
    %139 = arith.addi %134, %138 : vector<8x1xi32>
    %140 = vector.extract_strided_slice %113 {offsets = [0, 5], sizes = [8, 1], strides = [1, 1]} : vector<8x8xf32> to vector<8x1xf32>
    %141 = arith.addf %136, %140 : vector<8x1xf32>
    %142 = arith.cmpf olt, %141, %7 : vector<8x1xf32>
    %143 = arith.extui %142 : vector<8x1xi1> to vector<8x1xi32>
    %144 = arith.addi %139, %143 : vector<8x1xi32>
    %145 = vector.extract_strided_slice %113 {offsets = [0, 6], sizes = [8, 1], strides = [1, 1]} : vector<8x8xf32> to vector<8x1xf32>
    %146 = arith.addf %141, %145 : vector<8x1xf32>
    %147 = arith.cmpf olt, %146, %7 : vector<8x1xf32>
    %148 = arith.extui %147 : vector<8x1xi1> to vector<8x1xi32>
    %149 = arith.addi %144, %148 : vector<8x1xi32>
    %150 = tpu.iota {dimensions = array<i32: 1>} : vector<8x16xi32>
    %151 = vector.broadcast %149 : vector<8x1xi32> to vector<8x16xi32>
    %152 = arith.cmpi eq, %150, %151 : vector<8x16xi32>
    %153 = arith.extui %152 : vector<8x16xi1> to vector<8x16xi32>
    %154 = arith.sitofp %153 : vector<8x16xi32> to vector<8x16xf32>
    %155 = vector.extract_strided_slice %154 {offsets = [0, 0], sizes = [8, 8], strides = [1, 1]} : vector<8x16xf32> to vector<8x8xf32>
    %156 = arith.mulf %116, %155 : vector<8x8xf32>
    %cst_39 = arith.constant dense<0.000000e+00> : vector<8xf32>
    %157 = vector.multi_reduction <add>, %156, %cst_39 [1] : vector<8x8xf32> to vector<8xf32>
    %158 = vector.shape_cast %157 : vector<8xf32> to vector<8x1xf32>
    %159 = arith.mulf %113, %116 : vector<8x8xf32>
    %cst_40 = arith.constant dense<0.000000e+00> : vector<8xf32>
    %160 = vector.multi_reduction <add>, %159, %cst_40 [1] : vector<8x8xf32> to vector<8xf32>
    %161 = vector.shape_cast %160 : vector<8xf32> to vector<8x1xf32>
    %cst_41 = arith.constant 0.000000e+00 : f32
    %162 = vector.broadcast %cst_41 : f32 to vector<8x1xf32>
    %163 = arith.subf %162, %161 : vector<8x1xf32>
    %c384_42 = arith.constant 384 : index
    %c0_43 = arith.constant 0 : index
    %164 = vector.load %arg5[%c384_42, %c0_43] : memref<784x64xbf16, #tpu.memory_space<vmem>>, vector<256x64xbf16>
    %cst_44 = arith.constant dense<0.000000e+00> : vector<8x64xf32>
    %165 = tpu.matmul %83, %164, %cst_44 {dimension_numbers = #tpu.dot_dimension_numbers<[1], [0], [0], [1], [0, 0, 1, 1], [], []>} : vector<8x256xbf16>, vector<256x64xbf16>, vector<8x64xf32> -> vector<8x64xf32>
    %166 = arith.truncf %154 : vector<8x16xf32> to vector<8x16xbf16>
    %c640 = arith.constant 640 : index
    %c0_45 = arith.constant 0 : index
    %167 = vector.load %arg5[%c640, %c0_45] : memref<784x64xbf16, #tpu.memory_space<vmem>>, vector<16x64xbf16>
    %cst_46 = arith.constant dense<0.000000e+00> : vector<8x64xf32>
    %168 = tpu.matmul %166, %167, %cst_46 {dimension_numbers = #tpu.dot_dimension_numbers<[1], [0], [0], [1], [0, 0, 1, 1], [], []>} : vector<8x16xbf16>, vector<16x64xbf16>, vector<8x64xf32> -> vector<8x64xf32>
    %169 = arith.addf %165, %168 : vector<8x64xf32>
    %c0_47 = arith.constant 0 : index
    %c1408 = arith.constant 1408 : index
    %170 = vector.load %arg6[%c0_47, %c1408] : memref<1x1792xf32, #tpu.memory_space<vmem>>, vector<1x64xf32>
    %171 = vector.broadcast %170 : vector<1x64xf32> to vector<8x64xf32>
    %172 = arith.addf %169, %171 : vector<8x64xf32>
    %173 = math.tanh %172 : vector<8x64xf32>
    %174 = arith.truncf %173 : vector<8x64xf32> to vector<8x64xbf16>
    %c656 = arith.constant 656 : index
    %c0_48 = arith.constant 0 : index
    %175 = vector.load %arg5[%c656, %c0_48] : memref<784x64xbf16, #tpu.memory_space<vmem>>, vector<64x64xbf16>
    %cst_49 = arith.constant dense<0.000000e+00> : vector<8x64xf32>
    %176 = tpu.matmul %174, %175, %cst_49 {dimension_numbers = #tpu.dot_dimension_numbers<[1], [0], [0], [1], [0, 0, 1, 1], [], []>} : vector<8x64xbf16>, vector<64x64xbf16>, vector<8x64xf32> -> vector<8x64xf32>
    %c0_50 = arith.constant 0 : index
    %c1536 = arith.constant 1536 : index
    %177 = vector.load %arg6[%c0_50, %c1536] : memref<1x1792xf32, #tpu.memory_space<vmem>>, vector<1x64xf32>
    %178 = vector.broadcast %177 : vector<1x64xf32> to vector<8x64xf32>
    %179 = arith.addf %176, %178 : vector<8x64xf32>
    %180 = math.tanh %179 : vector<8x64xf32>
    %181 = arith.truncf %180 : vector<8x64xf32> to vector<8x64xbf16>
    %c720 = arith.constant 720 : index
    %c0_51 = arith.constant 0 : index
    %182 = vector.load %arg5[%c720, %c0_51] : memref<784x64xbf16, #tpu.memory_space<vmem>>, vector<64x64xbf16>
    %cst_52 = arith.constant dense<0.000000e+00> : vector<8x64xf32>
    %183 = tpu.matmul %181, %182, %cst_52 {dimension_numbers = #tpu.dot_dimension_numbers<[1], [0], [0], [1], [0, 0, 1, 1], [], []>} : vector<8x64xbf16>, vector<64x64xbf16>, vector<8x64xf32> -> vector<8x64xf32>
    %c0_53 = arith.constant 0 : index
    %c1664 = arith.constant 1664 : index
    %184 = vector.load %arg6[%c0_53, %c1664] : memref<1x1792xf32, #tpu.memory_space<vmem>>, vector<1x64xf32>
    %185 = vector.broadcast %184 : vector<1x64xf32> to vector<8x64xf32>
    %186 = arith.addf %183, %185 : vector<8x64xf32>
    %187 = arith.sitofp %149 : vector<8x1xi32> to vector<8x1xf32>
    %cst_54 = arith.constant 0.000000e+00 : f32
    %188 = vector.broadcast %cst_54 : f32 to vector<8x4xf32>
    %cst_55 = arith.constant 0.000000e+00 : f32
    %189 = vector.broadcast %cst_55 : f32 to vector<8x48xf32>
    %190 = tpu.concatenate %113, %187, %158, %163, %104, %188, %186, %189 in 1 : vector<8x8xf32>, vector<8x1xf32>, vector<8x1xf32>, vector<8x1xf32>, vector<8x1xf32>, vector<8x4xf32>, vector<8x64xf32>, vector<8x48xf32> -> vector<8x128xf32>
    %c0_56 = arith.constant 0 : index
    %c0_57 = arith.constant 0 : index
    %c0_58 = arith.constant 0 : index
    %191 = vector.load %arg7[%c0_56, %c0_57, %c0_58] : memref<1x8x128xf32, #tpu.memory_space<vmem>>, vector<1x8x128xf32>
    %192 = vector.shape_cast %191 : vector<1x8x128xf32> to vector<8x128xf32>
    %193 = vector.shape_cast %190 : vector<8x128xf32> to vector<1x8x128xf32>
    tpu.vector_store %arg7[%c0_56, %c0_57, %c0_58], %193 {strides = array<i32>} : memref<1x8x128xf32, #tpu.memory_space<vmem>>, vector<1x8x128xf32>,
    return
  }
  func.func @transform_0(%arg0: i32) -> (i32, i32, i32) {
    %c0_i32 = arith.constant 0 : i32
    %c0_i32_0 = arith.constant 0 : i32
    %c0_i32_1 = arith.constant 0 : i32
    return %arg0, %c0_i32, %c0_i32_0 : i32, i32, i32
  }
  func.func @transform_1(%arg0: i32) -> (i32, i32) {
    %c0_i32 = arith.constant 0 : i32
    %c0_i32_0 = arith.constant 0 : i32
    %c0_i32_1 = arith.constant 0 : i32
    return %c0_i32, %c0_i32_0 : i32, i32
  }
  func.func @transform_2(%arg0: i32) -> (i32, i32) {
    %c0_i32 = arith.constant 0 : i32
    %c0_i32_0 = arith.constant 0 : i32
    %c0_i32_1 = arith.constant 0 : i32
    return %c0_i32, %c0_i32_0 : i32, i32
  }
  func.func @transform_3(%arg0: i32) -> (i32, i32) {
    %c0_i32 = arith.constant 0 : i32
    %c0_i32_0 = arith.constant 0 : i32
    %c0_i32_1 = arith.constant 0 : i32
    return %c0_i32, %c0_i32_0 : i32, i32
  }
  func.func @transform_4(%arg0: i32) -> (i32, i32) {
    %c0_i32 = arith.constant 0 : i32
    %c0_i32_0 = arith.constant 0 : i32
    %c0_i32_1 = arith.constant 0 : i32
    return %c0_i32, %c0_i32_0 : i32, i32
  }
  func.func @transform_5(%arg0: i32) -> (i32, i32) {
    %c0_i32 = arith.constant 0 : i32
    %c0_i32_0 = arith.constant 0 : i32
    %c0_i32_1 = arith.constant 0 : i32
    return %c0_i32, %c0_i32_0 : i32, i32
  }
  func.func @transform_6(%arg0: i32) -> (i32, i32, i32) {
    %c0_i32 = arith.constant 0 : i32
    %c0_i32_0 = arith.constant 0 : i32
    %c0_i32_1 = arith.constant 0 : i32
    return %arg0, %c0_i32, %c0_i32_0 : i32, i32, i32
  }
  func.func @transform_7(%arg0: i32) -> (i32, i32) {
    %c0_i32 = arith.constant 0 : i32
    %c0_i32_0 = arith.constant 0 : i32
    %c0_i32_1 = arith.constant 0 : i32
    return %c0_i32, %c0_i32_0 : i32, i32
  }
}

</mosaic_0001>

<llo_original>
// kernel: _run_rollout_kernel.1
$region0: #{_run_rollout_kernel.1}
  #allocation0 [shape = 'u32[]', space=smem, size = 0x4, offset = 0x4, fixed_abs, tag = 'smem constant byte address 0x4 - core index']
  #allocation1 [shape = 'u32[72,128]{1,0:T(1,128)}', space=vmem, size = 0x9000, scoped, tag = 'internal scratch']
  %s0 = inlined_call_operand.vmem [shape: f32[1,8,64], index: 0, kind: input, shape index: {}]
  %s1 = inlined_call_operand.vmem [shape: f32[8,512], index: 1, kind: input, shape index: {}]
  %s2 = inlined_call_operand.hbm [shape: bf16[32,1024], index: 2, kind: input, shape index: {}]
  %s3 = inlined_call_operand.vmem [shape: bf16[256,512], index: 3, kind: input, shape index: {}]
  %s4 = inlined_call_operand.vmem [shape: bf16[784,64], index: 4, kind: input, shape index: {}]
  %s5 = inlined_call_operand.vmem [shape: f32[1,1792], index: 5, kind: input, shape index: {}]
  %s6 = inlined_call_operand.hbm [shape: f32[1,8,128], index: 6, kind: output, shape index: {0}]
  %s7 = inlined_call_operand.hbm [shape: f32[8,512], index: 7, kind: output, shape index: {1}]
  %8 = xla_tuple %s6, %s7
  %s9 = sld [smem:[#allocation0]]
  $region50: #{_run_rollout_kernel.1} parent=0
    _
  %s11 = ssub.s32 1, %s9
  %s12 = scalar_select 0, %s11, %s9
  $region1: #{_run_rollout_kernel.1} parent=0
    #allocation2 [shape = 'u8[65536]{0}', space=vmem, size = 0x10000, scoped, tag = 'input window, operand 2, single buffered']
    #allocation3 [shape = 's32[1]{0}', space=sflag, size = 0x4, scoped, tag = 'scoped memory for _run_rollout_kernel.1']
    #allocation4 [shape = 's32[1]{0}', space=sflag, size = 0x4, scoped, tag = 'scoped memory for _run_rollout_kernel.1']
    #allocation5 [shape = 'u8[4096]{0}', space=vmem, size = 0x1000, scoped, tag = 'output window, operand 0, single buffered']
    #allocation6 [shape = 'u8[16384]{0}', space=vmem, size = 0x4000, scoped, tag = 'output window, operand 1, single buffered']
    #allocation7 [shape = 's32[1]{0}', space=sflag, size = 0x4, scoped, tag = 'scoped memory for _run_rollout_kernel.1']
    %13 = vsyncpa [#allocation3], 0
    %14 = vsyncpa [#allocation4], 0
    %15 = vsyncpa [#allocation7], 0
    // Predicated region
    $region2: #{_run_rollout_kernel.1} parent=1 // pred_check
      _
    $region3: #{_run_rollout_kernel.1} parent=1 // pred_check_branch
      %17 = sbr.rel (0) target = $region5
    $region4: #{_run_rollout_kernel.1} parent=1 // pred_region
      _
    $region5: #{_run_rollout_kernel.1} parent=1 // pred_fallthru
      _
    // Predicated region
    $region6: #{_run_rollout_kernel.1} parent=1 // pred_check
      _
    $region7: #{_run_rollout_kernel.1} parent=1 // pred_check_branch
      %19 = sbr.rel (0) target = $region9
    $region8: #{_run_rollout_kernel.1} parent=1 // pred_region
      _
    $region9: #{_run_rollout_kernel.1} parent=1 // pred_fallthru
      _
    // Predicated region
    $region10: #{_run_rollout_kernel.1} parent=1 // pred_check
      _
    $region11: #{_run_rollout_kernel.1} parent=1 // pred_check_branch
      %21 = sbr.rel (0) target = $region13
    $region12: #{_run_rollout_kernel.1} parent=1 // pred_region
      %23 = vsyncadd [#allocation3], 0
      %s24 = sshll.u32 %s2, 4
      %s25 = int_to_ptr.hbm [resolvable:$true] %s24
      %s26 = sshll.u32 [#allocation2], 4
      %s27 = int_to_ptr.vmem [resolvable:$true] %s26
      %32 = dma.hbm_to_vmem [thread:$0]  %s25, 2048, %s27, [#allocation3], 512, 512, 32
    $region13: #{_run_rollout_kernel.1} parent=1 // pred_fallthru
      _
    // Predicated region
    $region14: #{_run_rollout_kernel.1} parent=1 // pred_check
      _
    $region15: #{_run_rollout_kernel.1} parent=1 // pred_check_branch
      %34 = sbr.rel (0) target = $region17
    $region16: #{_run_rollout_kernel.1} parent=1 // pred_region
      _
    $region17: #{_run_rollout_kernel.1} parent=1 // pred_fallthru
      _
    // Predicated region
    $region18: #{_run_rollout_kernel.1} parent=1 // pred_check
      _
    $region19: #{_run_rollout_kernel.1} parent=1 // pred_check_branch
      %36 = sbr.rel (0) target = $region21
    $region20: #{_run_rollout_kernel.1} parent=1 // pred_region
      _
    $region21: #{_run_rollout_kernel.1} parent=1 // pred_fallthru
      _
    // Predicated region
    $region22: #{_run_rollout_kernel.1} parent=1 // pred_check
      _
    $region23: #{_run_rollout_kernel.1} parent=1 // pred_check_branch
      %38 = sbr.rel (0) target = $region25
    $region24: #{_run_rollout_kernel.1} parent=1 // pred_region
      _
    $region25: #{_run_rollout_kernel.1} parent=1 // pred_fallthru
      _
    // Predicated region
    $region26: #{_run_rollout_kernel.1} parent=1 // pred_check
      _
    $region27: #{_run_rollout_kernel.1} parent=1 // pred_check_branch
      %40 = sbr.rel (0) target = $region29
    $region28: #{_run_rollout_kernel.1} parent=1 // pred_region
      %42 = dma.done [#allocation3], 2048
    $region29: #{_run_rollout_kernel.1} parent=1 // pred_fallthru
      _
    %p44 = scmp.eq.s32.totalorder 0, 0
    // Predicated region
    $region30: #{_run_rollout_kernel.1} parent=1 // pred_check
      %p45 = pneg %p44
    $region31: #{_run_rollout_kernel.1} parent=1 // pred_check_branch
      %47 = sbr.rel (%p45) target = $region33
    $region32: #{_run_rollout_kernel.1} parent=1 // pred_region
      %v48 = vld [vmem:[%s1] sm:$0xff]
      %v49 = vld [vmem:[%s1 + $0x8] sm:$0xff]
      %v50 = vld [vmem:[%s1 + $0x10] sm:$0xff]
      %v51 = vld [vmem:[%s1 + $0x18] sm:$0xff]
      %52 = vst [vmem:[#allocation6] sm:$0xff] %v48
      %53 = vst [vmem:[#allocation6 + $0x8] sm:$0xff] %v49
      %54 = vst [vmem:[#allocation6 + $0x10] sm:$0xff] %v50
      %55 = vst [vmem:[#allocation6 + $0x18] sm:$0xff] %v51
    $region33: #{_run_rollout_kernel.1} parent=1 // pred_fallthru
      _
    %v56 = vld [vmem:[%s0] sm:$0xff]
    %v57 = vpack.c.bf16 %v56, %v56
    %v58 = vld [vmem:[#allocation6] sm:$0xff]
    %v59 = vld [vmem:[#allocation6 + $0x8] sm:$0xff]
    %v60 = vld [vmem:[#allocation6 + $0x10] sm:$0xff]
    %v61 = vld [vmem:[#allocation6 + $0x18] sm:$0xff]
    %v62 = vpack.c.bf16 %v58, %v58
    %v63 = vpack.c.bf16 %v60, %v60
    %v64 = vld [vmem:[#allocation2] sm:$0xff]
    %v65 = vld [vmem:[#allocation2 + $0x8] sm:$0xff]
    %v66 = vld [vmem:[#allocation2 + $0x10] sm:$0xff]
    %v67 = vld [vmem:[#allocation2 + $0x18] sm:$0xff]
    %v68 = vld [vmem:[#allocation2 + $0x20] sm:$0xff]
    %v69 = vld [vmem:[#allocation2 + $0x28] sm:$0xff]
    %v70 = vld [vmem:[#allocation2 + $0x30] sm:$0xff]
    %v71 = vld [vmem:[#allocation2 + $0x38] sm:$0xff]
    %v72 = vld [vmem:[#allocation2 + $0x40] sm:$0xff]
    %v73 = vld [vmem:[#allocation2 + $0x48] sm:$0xff]
    %v74 = vld [vmem:[#allocation2 + $0x50] sm:$0xff]
    %v75 = vld [vmem:[#allocation2 + $0x58] sm:$0xff]
    %v76 = vld [vmem:[#allocation2 + $0x60] sm:$0xff]
    %v77 = vld [vmem:[#allocation2 + $0x68] sm:$0xff]
    %v78 = vld [vmem:[#allocation2 + $0x70] sm:$0xff]
    %v79 = vld [vmem:[#allocation2 + $0x78] sm:$0xff]
    %v80 = vld [vmem:[%s5] sm:$0xff]
    %v82 = vperm.slane %v80, 0
    %v83 = vperm.slane %v80, 1
    %v84 = vperm.slane %v80, 2
    %v85 = vperm.slane %v80, 3
    %v86 = vperm.slane %v80, 4
    %v87 = vperm.slane %v80, 5
    %v88 = vperm.slane %v80, 6
    %v89 = vperm.slane %v80, 7
    %v114 = vunpack.c.l.b16 %v64
    %v115 = vunpack.c.h.b16 %v64
    %v116 = vunpack.c.l.b16 %v65
    %v117 = vunpack.c.h.b16 %v65
    %v118 = vunpack.c.l.b16 %v66
    %v119 = vunpack.c.h.b16 %v66
    %v120 = vunpack.c.l.b16 %v67
    %v121 = vunpack.c.h.b16 %v67
    %v122 = vunpack.c.l.b16 %v68
    %v123 = vunpack.c.h.b16 %v68
    %v124 = vunpack.c.l.b16 %v69
    %v125 = vunpack.c.h.b16 %v69
    %v126 = vunpack.c.l.b16 %v70
    %v127 = vunpack.c.h.b16 %v70
    %v128 = vunpack.c.l.b16 %v71
    %v129 = vunpack.c.h.b16 %v71
    %v130 = vunpack.c.l.b16 %v72
    %v131 = vunpack.c.h.b16 %v72
    %v132 = vunpack.c.l.b16 %v73
    %v133 = vunpack.c.h.b16 %v73
    %v134 = vunpack.c.l.b16 %v74
    %v135 = vunpack.c.h.b16 %v74
    %v136 = vunpack.c.l.b16 %v75
    %v137 = vunpack.c.h.b16 %v75
    %v138 = vunpack.c.l.b16 %v76
    %v139 = vunpack.c.h.b16 %v76
    %v140 = vunpack.c.l.b16 %v77
    %v141 = vunpack.c.h.b16 %v77
    %v142 = vunpack.c.l.b16 %v78
    %v143 = vunpack.c.h.b16 %v78
    %v144 = vunpack.c.l.b16 %v79
    %v145 = vunpack.c.h.b16 %v79
    %v146 = vpack.c.b16 %v122, %v114
    %v147 = vpack.c.b16 %v123, %v115
    %v148 = vpack.c.b16 %v124, %v116
    %v149 = vpack.c.b16 %v125, %v117
    %v150 = vpack.c.b16 %v126, %v118
    %v151 = vpack.c.b16 %v127, %v119
    %v152 = vpack.c.b16 %v128, %v120
    %v153 = vpack.c.b16 %v129, %v121
    %v154 = vpack.c.b16 %v138, %v130
    %v155 = vpack.c.b16 %v139, %v131
    %v156 = vpack.c.b16 %v140, %v132
    %v157 = vpack.c.b16 %v141, %v133
    %v158 = vpack.c.b16 %v142, %v134
    %v159 = vpack.c.b16 %v143, %v135
    %v160 = vpack.c.b16 %v144, %v136
    %v161 = vpack.c.b16 %v145, %v137
    %vm178 = vcmask 261120
    %v180 = vsel %vm178, %v57, 0
    %182 = vmatpush.bf16.msra.mxu0 0
    %183 = vmatpush.bf16.msra.mxu0 0
    %184 = vmatpush.bf16.msra.mxu0 0
    %185 = vmatpush.bf16.msra.mxu0 0
    %186 = vmatpush.bf16.msra.mxu0 0
    %187 = vmatpush.bf16.msra.mxu0 0
    %188 = vmatpush.bf16.msra.mxu0 %v154
    %189 = vmatpush.bf16.msra.mxu0 %v146
    %190 = vmatmul.bf16.gmra.mxu0 %v180
    %v191 = vpop.f32.mrf.mxu0
    %v192 = vadd.f32 %v82, %v191
    %v193 = vpop.f32.mrf.mxu0
    %194 = vdwg.mxu0
    %195 = vmatpush.bf16.msra.mxu0 0
    %196 = vmatpush.bf16.msra.mxu0 0
    %197 = vmatpush.bf16.msra.mxu0 0
    %198 = vmatpush.bf16.msra.mxu0 0
    %199 = vmatpush.bf16.msra.mxu0 0
    %200 = vmatpush.bf16.msra.mxu0 0
    %201 = vmatpush.bf16.msra.mxu0 %v155
    %202 = vmatpush.bf16.msra.mxu0 %v147
    %203 = vmatmul.bf16.gmra.mxu0 %v180
    %v204 = vpop.f32.mrf.mxu0
    %v205 = vadd.f32 %v83, %v204
    %v206 = vpop.f32.mrf.mxu0
    %207 = vdwg.mxu0
    %208 = vmatpush.bf16.msra.mxu0 0
    %209 = vmatpush.bf16.msra.mxu0 0
    %210 = vmatpush.bf16.msra.mxu0 0
    %211 = vmatpush.bf16.msra.mxu0 0
    %212 = vmatpush.bf16.msra.mxu0 0
    %213 = vmatpush.bf16.msra.mxu0 0
    %214 = vmatpush.bf16.msra.mxu0 %v156
    %215 = vmatpush.bf16.msra.mxu0 %v148
    %216 = vmatmul.bf16.gmra.mxu0 %v180
    %v217 = vpop.f32.mrf.mxu0
    %v218 = vadd.f32 %v84, %v217
    %v219 = vpop.f32.mrf.mxu0
    %220 = vdwg.mxu0
    %221 = vmatpush.bf16.msra.mxu0 0
    %222 = vmatpush.bf16.msra.mxu0 0
    %223 = vmatpush.bf16.msra.mxu0 0
    %224 = vmatpush.bf16.msra.mxu0 0
    %225 = vmatpush.bf16.msra.mxu0 0
    %226 = vmatpush.bf16.msra.mxu0 0
    %227 = vmatpush.bf16.msra.mxu0 %v157
    %228 = vmatpush.bf16.msra.mxu0 %v149
    %229 = vmatmul.bf16.gmra.mxu0 %v180
    %v230 = vpop.f32.mrf.mxu0
    %v231 = vadd.f32 %v85, %v230
    %v232 = vpop.f32.mrf.mxu0
    %233 = vdwg.mxu0
    %234 = vmatpush.bf16.msra.mxu0 0
    %235 = vmatpush.bf16.msra.mxu0 0
    %236 = vmatpush.bf16.msra.mxu0 0
    %237 = vmatpush.bf16.msra.mxu0 0
    %238 = vmatpush.bf16.msra.mxu0 0
    %239 = vmatpush.bf16.msra.mxu0 0
    %240 = vmatpush.bf16.msra.mxu0 %v158
    %241 = vmatpush.bf16.msra.mxu0 %v150
    %242 = vmatmul.bf16.gmra.mxu0 %v180
    %v243 = vpop.f32.mrf.mxu0
    %v244 = vadd.f32 %v86, %v243
    %v245 = vpop.f32.mrf.mxu0
    %246 = vdwg.mxu0
    %247 = vmatpush.bf16.msra.mxu0 0
    %248 = vmatpush.bf16.msra.mxu0 0
    %249 = vmatpush.bf16.msra.mxu0 0
    %250 = vmatpush.bf16.msra.mxu0 0
    %251 = vmatpush.bf16.msra.mxu0 0
    %252 = vmatpush.bf16.msra.mxu0 0
    %253 = vmatpush.bf16.msra.mxu0 %v159
    %254 = vmatpush.bf16.msra.mxu0 %v151
    %255 = vmatmul.bf16.gmra.mxu0 %v180
    %v256 = vpop.f32.mrf.mxu0
    %v257 = vadd.f32 %v87, %v256
    %v258 = vpop.f32.mrf.mxu0
    %259 = vdwg.mxu0
    %260 = vmatpush.bf16.msra.mxu0 0
    %261 = vmatpush.bf16.msra.mxu0 0
    %262 = vmatpush.bf16.msra.mxu0 0
    %263 = vmatpush.bf16.msra.mxu0 0
    %264 = vmatpush.bf16.msra.mxu0 0
    %265 = vmatpush.bf16.msra.mxu0 0
    %266 = vmatpush.bf16.msra.mxu0 %v160
    %267 = vmatpush.bf16.msra.mxu0 %v152
    %268 = vmatmul.bf16.gmra.mxu0 %v180
    %v269 = vpop.f32.mrf.mxu0
    %v270 = vadd.f32 %v88, %v269
    %v271 = vpop.f32.mrf.mxu0
    %272 = vdwg.mxu0
    %273 = vmatpush.bf16.msra.mxu0 0
    %274 = vmatpush.bf16.msra.mxu0 0
    %275 = vmatpush.bf16.msra.mxu0 0
    %276 = vmatpush.bf16.msra.mxu0 0
    %277 = vmatpush.bf16.msra.mxu0 0
    %278 = vmatpush.bf16.msra.mxu0 0
    %279 = vmatpush.bf16.msra.mxu0 %v161
    %280 = vmatpush.bf16.msra.mxu0 %v153
    %281 = vmatmul.bf16.gmra.mxu0 %v180
    %v282 = vpop.f32.mrf.mxu0
    %v283 = vadd.f32 %v89, %v282
    %v284 = vpop.f32.mrf.mxu0
    %285 = vdwg.mxu0
    %v286 = vld [vmem:[%s3] sm:$0xff]
    %v287 = vld [vmem:[%s3 + $0x8] sm:$0xff]
    %v288 = vld [vmem:[%s3 + $0x10] sm:$0xff]
    %v289 = vld [vmem:[%s3 + $0x18] sm:$0xff]
    %v290 = vld [vmem:[%s3 + $0x20] sm:$0xff]
    %v291 = vld [vmem:[%s3 + $0x28] sm:$0xff]
    %v292 = vld [vmem:[%s3 + $0x30] sm:$0xff]
    %v293 = vld [vmem:[%s3 + $0x38] sm:$0xff]
    %v294 = vld [vmem:[%s3 + $0x40] sm:$0xff]
    %v295 = vld [vmem:[%s3 + $0x48] sm:$0xff]
    %v296 = vld [vmem:[%s3 + $0x50] sm:$0xff]
    %v297 = vld [vmem:[%s3 + $0x58] sm:$0xff]
    %v298 = vld [vmem:[%s3 + $0x60] sm:$0xff]
    %v299 = vld [vmem:[%s3 + $0x68] sm:$0xff]
    %v300 = vld [vmem:[%s3 + $0x70] sm:$0xff]
    %v301 = vld [vmem:[%s3 + $0x78] sm:$0xff]
    %v302 = vld [vmem:[%s3 + $0x80] sm:$0xff]
    %v303 = vld [vmem:[%s3 + $0x88] sm:$0xff]
    %v304 = vld [vmem:[%s3 + $0x90] sm:$0xff]
    %v305 = vld [vmem:[%s3 + $0x98] sm:$0xff]
    %v306 = vld [vmem:[%s3 + $0xa0] sm:$0xff]
    %v307 = vld [vmem:[%s3 + $0xa8] sm:$0xff]
    %v308 = vld [vmem:[%s3 + $0xb0] sm:$0xff]
    %v309 = vld [vmem:[%s3 + $0xb8] sm:$0xff]
    %v310 = vld [vmem:[%s3 + $0xc0] sm:$0xff]
    %v311 = vld [vmem:[%s3 + $0xc8] sm:$0xff]
    %v312 = vld [vmem:[%s3 + $0xd0] sm:$0xff]
    %v313 = vld [vmem:[%s3 + $0xd8] sm:$0xff]
    %v314 = vld [vmem:[%s3 + $0xe0] sm:$0xff]
    %v315 = vld [vmem:[%s3 + $0xe8] sm:$0xff]
    %v316 = vld [vmem:[%s3 + $0xf0] sm:$0xff]
    %v317 = vld [vmem:[%s3 + $0xf8] sm:$0xff]
    %v350 = vunpack.c.l.b16 %v286
    %v351 = vunpack.c.h.b16 %v286
    %v352 = vunpack.c.l.b16 %v287
    %v353 = vunpack.c.h.b16 %v287
    %v354 = vunpack.c.l.b16 %v288
    %v355 = vunpack.c.h.b16 %v288
    %v356 = vunpack.c.l.b16 %v289
    %v357 = vunpack.c.h.b16 %v289
    %v358 = vunpack.c.l.b16 %v290
    %v359 = vunpack.c.h.b16 %v290
    %v360 = vunpack.c.l.b16 %v291
    %v361 = vunpack.c.h.b16 %v291
    %v362 = vunpack.c.l.b16 %v292
    %v363 = vunpack.c.h.b16 %v292
    %v364 = vunpack.c.l.b16 %v293
    %v365 = vunpack.c.h.b16 %v293
    %v366 = vunpack.c.l.b16 %v294
    %v367 = vunpack.c.h.b16 %v294
    %v368 = vunpack.c.l.b16 %v295
    %v369 = vunpack.c.h.b16 %v295
    %v370 = vunpack.c.l.b16 %v296
    %v371 = vunpack.c.h.b16 %v296
    %v372 = vunpack.c.l.b16 %v297
    %v373 = vunpack.c.h.b16 %v297
    %v374 = vunpack.c.l.b16 %v298
    %v375 = vunpack.c.h.b16 %v298
    %v376 = vunpack.c.l.b16 %v299
    %v377 = vunpack.c.h.b16 %v299
    %v378 = vunpack.c.l.b16 %v300
    %v379 = vunpack.c.h.b16 %v300
    %v380 = vunpack.c.l.b16 %v301
    %v381 = vunpack.c.h.b16 %v301
    %v382 = vunpack.c.l.b16 %v302
    %v383 = vunpack.c.h.b16 %v302
    %v384 = vunpack.c.l.b16 %v303
    %v385 = vunpack.c.h.b16 %v303
    %v386 = vunpack.c.l.b16 %v304
    %v387 = vunpack.c.h.b16 %v304
    %v388 = vunpack.c.l.b16 %v305
    %v389 = vunpack.c.h.b16 %v305
    %v390 = vunpack.c.l.b16 %v306
    %v391 = vunpack.c.h.b16 %v306
    %v392 = vunpack.c.l.b16 %v307
    %v393 = vunpack.c.h.b16 %v307
    %v394 = vunpack.c.l.b16 %v308
    %v395 = vunpack.c.h.b16 %v308
    %v396 = vunpack.c.l.b16 %v309
    %v397 = vunpack.c.h.b16 %v309
    %v398 = vunpack.c.l.b16 %v310
    %v399 = vunpack.c.h.b16 %v310
    %v400 = vunpack.c.l.b16 %v311
    %v401 = vunpack.c.h.b16 %v311
    %v402 = vunpack.c.l.b16 %v312
    %v403 = vunpack.c.h.b16 %v312
    %v404 = vunpack.c.l.b16 %v313
    %v405 = vunpack.c.h.b16 %v313
    %v406 = vunpack.c.l.b16 %v314
    %v407 = vunpack.c.h.b16 %v314
    %v408 = vunpack.c.l.b16 %v315
    %v409 = vunpack.c.h.b16 %v315
    %v410 = vunpack.c.l.b16 %v316
    %v411 = vunpack.c.h.b16 %v316
    %v412 = vunpack.c.l.b16 %v317
    %v413 = vunpack.c.h.b16 %v317
    %v414 = vpack.c.b16 %v354, %v350
    %v415 = vpack.c.b16 %v355, %v351
    %v416 = vpack.c.b16 %v356, %v352
    %v417 = vpack.c.b16 %v357, %v353
    %v418 = vpack.c.b16 %v362, %v358
    %v419 = vpack.c.b16 %v363, %v359
    %v420 = vpack.c.b16 %v364, %v360
    %v421 = vpack.c.b16 %v365, %v361
    %v422 = vpack.c.b16 %v370, %v366
    %v423 = vpack.c.b16 %v371, %v367
    %v424 = vpack.c.b16 %v372, %v368
    %v425 = vpack.c.b16 %v373, %v369
    %v426 = vpack.c.b16 %v378, %v374
    %v427 = vpack.c.b16 %v379, %v375
    %v428 = vpack.c.b16 %v380, %v376
    %v429 = vpack.c.b16 %v381, %v377
    %v430 = vpack.c.b16 %v386, %v382
    %v431 = vpack.c.b16 %v387, %v383
    %v432 = vpack.c.b16 %v388, %v384
    %v433 = vpack.c.b16 %v389, %v385
    %v434 = vpack.c.b16 %v394, %v390
    %v435 = vpack.c.b16 %v395, %v391
    %v436 = vpack.c.b16 %v396, %v392
    %v437 = vpack.c.b16 %v397, %v393
    %v438 = vpack.c.b16 %v402, %v398
    %v439 = vpack.c.b16 %v403, %v399
    %v440 = vpack.c.b16 %v404, %v400
    %v441 = vpack.c.b16 %v405, %v401
    %v442 = vpack.c.b16 %v410, %v406
    %v443 = vpack.c.b16 %v411, %v407
    %v444 = vpack.c.b16 %v412, %v408
    %v445 = vpack.c.b16 %v413, %v409
    %478 = vmatpush.bf16.msra.mxu0 %v442
    %479 = vmatpush.bf16.msra.mxu0 %v438
    %480 = vmatpush.bf16.msra.mxu0 %v434
    %481 = vmatpush.bf16.msra.mxu0 %v430
    %482 = vmatpush.bf16.msra.mxu0 %v426
    %483 = vmatpush.bf16.msra.mxu0 %v422
    %484 = vmatpush.bf16.msra.mxu0 %v418
    %485 = vmatpush.bf16.msra.mxu0 %v414
    %486 = vmatmul.bf16.gmra.mxu0 %v62
    %v487 = vpop.f32.mrf.mxu0
    %v488 = vadd.f32 0.0, %v487
    %v489 = vpop.f32.mrf.mxu0
    %490 = vdwg.mxu0
    %491 = vmatpush.bf16.msra.mxu0 %v443
    %492 = vmatpush.bf16.msra.mxu0 %v439
    %493 = vmatpush.bf16.msra.mxu0 %v435
    %494 = vmatpush.bf16.msra.mxu0 %v431
    %495 = vmatpush.bf16.msra.mxu0 %v427
    %496 = vmatpush.bf16.msra.mxu0 %v423
    %497 = vmatpush.bf16.msra.mxu0 %v419
    %498 = vmatpush.bf16.msra.mxu0 %v415
    %499 = vmatmul.bf16.gmra.mxu0 %v62
    %v500 = vpop.f32.mrf.mxu0
    %v501 = vadd.f32 0.0, %v500
    %v502 = vpop.f32.mrf.mxu0
    %503 = vdwg.mxu0
    %504 = vmatpush.bf16.msra.mxu0 %v444
    %505 = vmatpush.bf16.msra.mxu0 %v440
    %506 = vmatpush.bf16.msra.mxu0 %v436
    %507 = vmatpush.bf16.msra.mxu0 %v432
    %508 = vmatpush.bf16.msra.mxu0 %v428
    %509 = vmatpush.bf16.msra.mxu0 %v424
    %510 = vmatpush.bf16.msra.mxu0 %v420
    %511 = vmatpush.bf16.msra.mxu0 %v416
    %512 = vmatmul.bf16.gmra.mxu0 %v62
    %v513 = vpop.f32.mrf.mxu0
    %v514 = vadd.f32 0.0, %v513
    %v515 = vpop.f32.mrf.mxu0
    %516 = vdwg.mxu0
    %517 = vmatpush.bf16.msra.mxu0 %v445
    %518 = vmatpush.bf16.msra.mxu0 %v441
    %519 = vmatpush.bf16.msra.mxu0 %v437
    %520 = vmatpush.bf16.msra.mxu0 %v433
    %521 = vmatpush.bf16.msra.mxu0 %v429
    %522 = vmatpush.bf16.msra.mxu0 %v425
    %523 = vmatpush.bf16.msra.mxu0 %v421
    %524 = vmatpush.bf16.msra.mxu0 %v417
    %525 = vmatmul.bf16.gmra.mxu0 %v62
    %v526 = vpop.f32.mrf.mxu0
    %v527 = vadd.f32 0.0, %v526
    %v528 = vpop.f32.mrf.mxu0
    %529 = vdwg.mxu0
    %v530 = vadd.f32 %v192, %v488
    %v531 = vadd.f32 %v205, %v501
    %v532 = vadd.f32 %v218, %v514
    %v533 = vadd.f32 %v231, %v527
    %v534 = vld [vmem:[%s3 + $0x100] sm:$0xff]
    %v535 = vld [vmem:[%s3 + $0x108] sm:$0xff]
    %v536 = vld [vmem:[%s3 + $0x110] sm:$0xff]
    %v537 = vld [vmem:[%s3 + $0x118] sm:$0xff]
    %v538 = vld [vmem:[%s3 + $0x120] sm:$0xff]
    %v539 = vld [vmem:[%s3 + $0x128] sm:$0xff]
    %v540 = vld [vmem:[%s3 + $0x130] sm:$0xff]
    %v541 = vld [vmem:[%s3 + $0x138] sm:$0xff]
    %v542 = vld [vmem:[%s3 + $0x140] sm:$0xff]
    %v543 = vld [vmem:[%s3 + $0x148] sm:$0xff]
    %v544 = vld [vmem:[%s3 + $0x150] sm:$0xff]
    %v545 = vld [vmem:[%s3 + $0x158] sm:$0xff]
    %v546 = vld [vmem:[%s3 + $0x160] sm:$0xff]
    %v547 = vld [vmem:[%s3 + $0x168] sm:$0xff]
    %v548 = vld [vmem:[%s3 + $0x170] sm:$0xff]
    %v549 = vld [vmem:[%s3 + $0x178] sm:$0xff]
    %v550 = vld [vmem:[%s3 + $0x180] sm:$0xff]
    %v551 = vld [vmem:[%s3 + $0x188] sm:$0xff]
    %v552 = vld [vmem:[%s3 + $0x190] sm:$0xff]
    %v553 = vld [vmem:[%s3 + $0x198] sm:$0xff]
    %v554 = vld [vmem:[%s3 + $0x1a0] sm:$0xff]
    %v555 = vld [vmem:[%s3 + $0x1a8] sm:$0xff]
    %v556 = vld [vmem:[%s3 + $0x1b0] sm:$0xff]
    %v557 = vld [vmem:[%s3 + $0x1b8] sm:$0xff]
    %v558 = vld [vmem:[%s3 + $0x1c0] sm:$0xff]
    %v559 = vld [vmem:[%s3 + $0x1c8] sm:$0xff]
    %v560 = vld [vmem:[%s3 + $0x1d0] sm:$0xff]
    %v561 = vld [vmem:[%s3 + $0x1d8] sm:$0xff]
    %v562 = vld [vmem:[%s3 + $0x1e0] sm:$0xff]
    %v563 = vld [vmem:[%s3 + $0x1e8] sm:$0xff]
    %v564 = vld [vmem:[%s3 + $0x1f0] sm:$0xff]
    %v565 = vld [vmem:[%s3 + $0x1f8] sm:$0xff]
    %v598 = vunpack.c.l.b16 %v534
    %v599 = vunpack.c.h.b16 %v534
    %v600 = vunpack.c.l.b16 %v535
    %v601 = vunpack.c.h.b16 %v535
    %v602 = vunpack.c.l.b16 %v536
    %v603 = vunpack.c.h.b16 %v536
    %v604 = vunpack.c.l.b16 %v537
    %v605 = vunpack.c.h.b16 %v537
    %v606 = vunpack.c.l.b16 %v538
    %v607 = vunpack.c.h.b16 %v538
    %v608 = vunpack.c.l.b16 %v539
    %v609 = vunpack.c.h.b16 %v539
    %v610 = vunpack.c.l.b16 %v540
    %v611 = vunpack.c.h.b16 %v540
    %v612 = vunpack.c.l.b16 %v541
    %v613 = vunpack.c.h.b16 %v541
    %v614 = vunpack.c.l.b16 %v542
    %v615 = vunpack.c.h.b16 %v542
    %v616 = vunpack.c.l.b16 %v543
    %v617 = vunpack.c.h.b16 %v543
    %v618 = vunpack.c.l.b16 %v544
    %v619 = vunpack.c.h.b16 %v544
    %v620 = vunpack.c.l.b16 %v545
    %v621 = vunpack.c.h.b16 %v545
    %v622 = vunpack.c.l.b16 %v546
    %v623 = vunpack.c.h.b16 %v546
    %v624 = vunpack.c.l.b16 %v547
    %v625 = vunpack.c.h.b16 %v547
    %v626 = vunpack.c.l.b16 %v548
    %v627 = vunpack.c.h.b16 %v548
    %v628 = vunpack.c.l.b16 %v549
    %v629 = vunpack.c.h.b16 %v549
    %v630 = vunpack.c.l.b16 %v550
    %v631 = vunpack.c.h.b16 %v550
    %v632 = vunpack.c.l.b16 %v551
    %v633 = vunpack.c.h.b16 %v551
    %v634 = vunpack.c.l.b16 %v552
    %v635 = vunpack.c.h.b16 %v552
    %v636 = vunpack.c.l.b16 %v553
    %v637 = vunpack.c.h.b16 %v553
    %v638 = vunpack.c.l.b16 %v554
    %v639 = vunpack.c.h.b16 %v554
    %v640 = vunpack.c.l.b16 %v555
    %v641 = vunpack.c.h.b16 %v555
    %v642 = vunpack.c.l.b16 %v556
    %v643 = vunpack.c.h.b16 %v556
    %v644 = vunpack.c.l.b16 %v557
    %v645 = vunpack.c.h.b16 %v557
    %v646 = vunpack.c.l.b16 %v558
    %v647 = vunpack.c.h.b16 %v558
    %v648 = vunpack.c.l.b16 %v559
    %v649 = vunpack.c.h.b16 %v559
    %v650 = vunpack.c.l.b16 %v560
    %v651 = vunpack.c.h.b16 %v560
    %v652 = vunpack.c.l.b16 %v561
    %v653 = vunpack.c.h.b16 %v561
    %v654 = vunpack.c.l.b16 %v562
    %v655 = vunpack.c.h.b16 %v562
    %v656 = vunpack.c.l.b16 %v563
    %v657 = vunpack.c.h.b16 %v563
    %v658 = vunpack.c.l.b16 %v564
    %v659 = vunpack.c.h.b16 %v564
    %v660 = vunpack.c.l.b16 %v565
    %v661 = vunpack.c.h.b16 %v565
    %v662 = vpack.c.b16 %v602, %v598
    %v663 = vpack.c.b16 %v603, %v599
    %v664 = vpack.c.b16 %v604, %v600
    %v665 = vpack.c.b16 %v605, %v601
    %v666 = vpack.c.b16 %v610, %v606
    %v667 = vpack.c.b16 %v611, %v607
    %v668 = vpack.c.b16 %v612, %v608
    %v669 = vpack.c.b16 %v613, %v609
    %v670 = vpack.c.b16 %v618, %v614
    %v671 = vpack.c.b16 %v619, %v615
    %v672 = vpack.c.b16 %v620, %v616
    %v673 = vpack.c.b16 %v621, %v617
    %v674 = vpack.c.b16 %v626, %v622
    %v675 = vpack.c.b16 %v627, %v623
    %v676 = vpack.c.b16 %v628, %v624
    %v677 = vpack.c.b16 %v629, %v625
    %v678 = vpack.c.b16 %v634, %v630
    %v679 = vpack.c.b16 %v635, %v631
    %v680 = vpack.c.b16 %v636, %v632
    %v681 = vpack.c.b16 %v637, %v633
    %v682 = vpack.c.b16 %v642, %v638
    %v683 = vpack.c.b16 %v643, %v639
    %v684 = vpack.c.b16 %v644, %v640
    %v685 = vpack.c.b16 %v645, %v641
    %v686 = vpack.c.b16 %v650, %v646
    %v687 = vpack.c.b16 %v651, %v647
    %v688 = vpack.c.b16 %v652, %v648
    %v689 = vpack.c.b16 %v653, %v649
    %v690 = vpack.c.b16 %v658, %v654
    %v691 = vpack.c.b16 %v659, %v655
    %v692 = vpack.c.b16 %v660, %v656
    %v693 = vpack.c.b16 %v661, %v657
    %726 = vmatpush.bf16.msra.mxu0 %v690
    %727 = vmatpush.bf16.msra.mxu0 %v686
    %728 = vmatpush.bf16.msra.mxu0 %v682
    %729 = vmatpush.bf16.msra.mxu0 %v678
    %730 = vmatpush.bf16.msra.mxu0 %v674
    %731 = vmatpush.bf16.msra.mxu0 %v670
    %732 = vmatpush.bf16.msra.mxu0 %v666
    %733 = vmatpush.bf16.msra.mxu0 %v662
    %734 = vmatmul.bf16.gmra.mxu0 %v63
    %v735 = vpop.f32.mrf.mxu0
    %v736 = vadd.f32 0.0, %v735
    %v737 = vpop.f32.mrf.mxu0
    %738 = vdwg.mxu0
    %739 = vmatpush.bf16.msra.mxu0 %v691
    %740 = vmatpush.bf16.msra.mxu0 %v687
    %741 = vmatpush.bf16.msra.mxu0 %v683
    %742 = vmatpush.bf16.msra.mxu0 %v679
    %743 = vmatpush.bf16.msra.mxu0 %v675
    %744 = vmatpush.bf16.msra.mxu0 %v671
    %745 = vmatpush.bf16.msra.mxu0 %v667
    %746 = vmatpush.bf16.msra.mxu0 %v663
    %747 = vmatmul.bf16.gmra.mxu0 %v63
    %v748 = vpop.f32.mrf.mxu0
    %v749 = vadd.f32 0.0, %v748
    %v750 = vpop.f32.mrf.mxu0
    %751 = vdwg.mxu0
    %752 = vmatpush.bf16.msra.mxu0 %v692
    %753 = vmatpush.bf16.msra.mxu0 %v688
    %754 = vmatpush.bf16.msra.mxu0 %v684
    %755 = vmatpush.bf16.msra.mxu0 %v680
    %756 = vmatpush.bf16.msra.mxu0 %v676
    %757 = vmatpush.bf16.msra.mxu0 %v672
    %758 = vmatpush.bf16.msra.mxu0 %v668
    %759 = vmatpush.bf16.msra.mxu0 %v664
    %760 = vmatmul.bf16.gmra.mxu0 %v63
    %v761 = vpop.f32.mrf.mxu0
    %v762 = vadd.f32 0.0, %v761
    %v763 = vpop.f32.mrf.mxu0
    %764 = vdwg.mxu0
    %765 = vmatpush.bf16.msra.mxu0 %v693
    %766 = vmatpush.bf16.msra.mxu0 %v689
    %767 = vmatpush.bf16.msra.mxu0 %v685
    %768 = vmatpush.bf16.msra.mxu0 %v681
    %769 = vmatpush.bf16.msra.mxu0 %v677
    %770 = vmatpush.bf16.msra.mxu0 %v673
    %771 = vmatpush.bf16.msra.mxu0 %v669
    %772 = vmatpush.bf16.msra.mxu0 %v665
    %773 = vmatmul.bf16.gmra.mxu0 %v63
    %v774 = vpop.f32.mrf.mxu0
    %v775 = vadd.f32 0.0, %v774
    %v776 = vpop.f32.mrf.mxu0
    %777 = vdwg.mxu0
    %v778 = vadd.f32 %v244, %v736
    %v779 = vadd.f32 %v257, %v749
    %v780 = vadd.f32 %v270, %v762
    %v781 = vadd.f32 %v283, %v775
    %v782 = vxor.u32 %v530, 2147483648
    %v783 = vmul.f32 %v782, 1.442695
    %v784 = vpow.pop %v783
    %v785 = vadd.f32 %v784, 1.0
    %v786 = vrcp.pop %v785
    %v787 = vmul.f32 %v785, %v786
    %v788 = vsub.f32 1.0, %v787
    %v789 = vmul.f32 %v786, %v788
    %v790 = vadd.f32 %v786, %v789
    %vm791 = vweird.f32 %v785
    %vm792 = vweird.f32 %v786
    %vm793 = vmor %vm791, %vm792
    %v794 = vsel %vm793, %v786, %v790
    %v795 = vand.u32 2147483647, %v785
    %vm796 = vcmp.eq.f32.partialorder %v795, 8.507059e+37
    %v797 = vand.u32 %v785, 2147483648
    %v798 = vor.u32 1.1754944e-38, %v797
    %v799 = vsel %vm796, %v798, %v794
    %v800 = vmul.f32 1.0, %v799
    %v801 = vxor.u32 %v531, 2147483648
    %v802 = vmul.f32 %v801, 1.442695
    %v803 = vpow.pop %v802
    %v804 = vadd.f32 %v803, 1.0
    %v805 = vrcp.pop %v804
    %v806 = vmul.f32 %v804, %v805
    %v807 = vsub.f32 1.0, %v806
    %v808 = vmul.f32 %v805, %v807
    %v809 = vadd.f32 %v805, %v808
    %vm810 = vweird.f32 %v804
    %vm811 = vweird.f32 %v805
    %vm812 = vmor %vm810, %vm811
    %v813 = vsel %vm812, %v805, %v809
    %v814 = vand.u32 2147483647, %v804
    %vm815 = vcmp.eq.f32.partialorder %v814, 8.507059e+37
    %v816 = vand.u32 %v804, 2147483648
    %v817 = vor.u32 1.1754944e-38, %v816
    %v818 = vsel %vm815, %v817, %v813
    %v819 = vmul.f32 1.0, %v818
    %v820 = vtanh.pop %v532
    %v821 = vxor.u32 %v533, 2147483648
    %v822 = vmul.f32 %v821, 1.442695
    %v823 = vpow.pop %v822
    %v824 = vadd.f32 %v823, 1.0
    %v825 = vrcp.pop %v824
    %v826 = vmul.f32 %v824, %v825
    %v827 = vsub.f32 1.0, %v826
    %v828 = vmul.f32 %v825, %v827
    %v829 = vadd.f32 %v825, %v828
    %vm830 = vweird.f32 %v824
    %vm831 = vweird.f32 %v825
    %vm832 = vmor %vm830, %vm831
    %v833 = vsel %vm832, %v825, %v829
    %v834 = vand.u32 2147483647, %v824
    %vm835 = vcmp.eq.f32.partialorder %v834, 8.507059e+37
    %v836 = vand.u32 %v824, 2147483648
    %v837 = vor.u32 1.1754944e-38, %v836
    %v838 = vsel %vm835, %v837, %v833
    %v839 = vmul.f32 1.0, %v838
    %v840 = vmul.f32 %v819, %v59
    %v841 = vmul.f32 %v800, %v820
    %v842 = vadd.f32 %v840, %v841
    %v843 = vtanh.pop %v842
    %v844 = vmul.f32 %v839, %v843
    %v845 = vxor.u32 %v778, 2147483648
    %v846 = vmul.f32 %v845, 1.442695
    %v847 = vpow.pop %v846
    %v848 = vadd.f32 %v847, 1.0
    %v849 = vrcp.pop %v848
    %v850 = vmul.f32 %v848, %v849
    %v851 = vsub.f32 1.0, %v850
    %v852 = vmul.f32 %v849, %v851
    %v853 = vadd.f32 %v849, %v852
    %vm854 = vweird.f32 %v848
    %vm855 = vweird.f32 %v849
    %vm856 = vmor %vm854, %vm855
    %v857 = vsel %vm856, %v849, %v853
    %v858 = vand.u32 2147483647, %v848
    %vm859 = vcmp.eq.f32.partialorder %v858, 8.507059e+37
    %v860 = vand.u32 %v848, 2147483648
    %v861 = vor.u32 1.1754944e-38, %v860
    %v862 = vsel %vm859, %v861, %v857
    %v863 = vmul.f32 1.0, %v862
    %v864 = vxor.u32 %v779, 2147483648
    %v865 = vmul.f32 %v864, 1.442695
    %v866 = vpow.pop %v865
    %v867 = vadd.f32 %v866, 1.0
    %v868 = vrcp.pop %v867
    %v869 = vmul.f32 %v867, %v868
    %v870 = vsub.f32 1.0, %v869
    %v871 = vmul.f32 %v868, %v870
    %v872 = vadd.f32 %v868, %v871
    %vm873 = vweird.f32 %v867
    %vm874 = vweird.f32 %v868
    %vm875 = vmor %vm873, %vm874
    %v876 = vsel %vm875, %v868, %v872
    %v877 = vand.u32 2147483647, %v867
    %vm878 = vcmp.eq.f32.partialorder %v877, 8.507059e+37
    %v879 = vand.u32 %v867, 2147483648
    %v880 = vor.u32 1.1754944e-38, %v879
    %v881 = vsel %vm878, %v880, %v876
    %v882 = vmul.f32 1.0, %v881
    %v883 = vtanh.pop %v780
    %v884 = vxor.u32 %v781, 2147483648
    %v885 = vmul.f32 %v884, 1.442695
    %v886 = vpow.pop %v885
    %v887 = vadd.f32 %v886, 1.0
    %v888 = vrcp.pop %v887
    %v889 = vmul.f32 %v887, %v888
    %v890 = vsub.f32 1.0, %v889
    %v891 = vmul.f32 %v888, %v890
    %v892 = vadd.f32 %v888, %v891
    %vm893 = vweird.f32 %v887
    %vm894 = vweird.f32 %v888
    %vm895 = vmor %vm893, %vm894
    %v896 = vsel %vm895, %v888, %v892
    %v897 = vand.u32 2147483647, %v887
    %vm898 = vcmp.eq.f32.partialorder %v897, 8.507059e+37
    %v899 = vand.u32 %v887, 2147483648
    %v900 = vor.u32 1.1754944e-38, %v899
    %v901 = vsel %vm898, %v900, %v896
    %v902 = vmul.f32 1.0, %v901
    %v903 = vmul.f32 %v882, %v61
    %v904 = vmul.f32 %v863, %v883
    %v905 = vadd.f32 %v903, %v904
    %v906 = vtanh.pop %v905
    %v907 = vmul.f32 %v902, %v906
    %908 = vst [vmem:[#allocation6] sm:$0xff] %v844
    %909 = vst [vmem:[#allocation6 + $0x8] sm:$0xff] %v842
    %910 = vst [vmem:[#allocation6 + $0x10] sm:$0xff] %v907
    %911 = vst [vmem:[#allocation6 + $0x18] sm:$0xff] %v905
    %v912 = vpack.c.bf16 %v844, %v844
    %v913 = vpack.c.bf16 %v907, %v907
    %v914 = vld [vmem:[%s4] sm:$0xf]
    %v915 = vld [vmem:[%s4 + $0x4] sm:$0xf]
    %v916 = vld [vmem:[%s4 + $0x8] sm:$0xf]
    %v917 = vld [vmem:[%s4 + $0xc] sm:$0xf]
    %v918 = vld [vmem:[%s4 + $0x10] sm:$0xf]
    %v919 = vld [vmem:[%s4 + $0x14] sm:$0xf]
    %v920 = vld [vmem:[%s4 + $0x18] sm:$0xf]
    %v921 = vld [vmem:[%s4 + $0x1c] sm:$0xf]
    %v922 = vld [vmem:[%s4 + $0x20] sm:$0xf]
    %v923 = vld [vmem:[%s4 + $0x24] sm:$0xf]
    %v924 = vld [vmem:[%s4 + $0x28] sm:$0xf]
    %v925 = vld [vmem:[%s4 + $0x2c] sm:$0xf]
    %v926 = vld [vmem:[%s4 + $0x30] sm:$0xf]
    %v927 = vld [vmem:[%s4 + $0x34] sm:$0xf]
    %v928 = vld [vmem:[%s4 + $0x38] sm:$0xf]
    %v929 = vld [vmem:[%s4 + $0x3c] sm:$0xf]
    %v930 = vld [vmem:[%s4 + $0x40] sm:$0xf]
    %v931 = vld [vmem:[%s4 + $0x44] sm:$0xf]
    %v932 = vld [vmem:[%s4 + $0x48] sm:$0xf]
    %v933 = vld [vmem:[%s4 + $0x4c] sm:$0xf]
    %v934 = vld [vmem:[%s4 + $0x50] sm:$0xf]
    %v935 = vld [vmem:[%s4 + $0x54] sm:$0xf]
    %v936 = vld [vmem:[%s4 + $0x58] sm:$0xf]
    %v937 = vld [vmem:[%s4 + $0x5c] sm:$0xf]
    %v938 = vld [vmem:[%s4 + $0x60] sm:$0xf]
    %v939 = vld [vmem:[%s4 + $0x64] sm:$0xf]
    %v940 = vld [vmem:[%s4 + $0x68] sm:$0xf]
    %v941 = vld [vmem:[%s4 + $0x6c] sm:$0xf]
    %v942 = vld [vmem:[%s4 + $0x70] sm:$0xf]
    %v943 = vld [vmem:[%s4 + $0x74] sm:$0xf]
    %v944 = vld [vmem:[%s4 + $0x78] sm:$0xf]
    %v945 = vld [vmem:[%s4 + $0x7c] sm:$0xf]
    %v946 = vld [vmem:[%s5 + $0x8] sm:$0x1]
    %v948 = vperm.slane %v946, 0
    %v982 = vunpack.c.l.b16 %v914
    %v983 = vunpack.c.l.b16 %v915
    %v984 = vunpack.c.l.b16 %v916
    %v985 = vunpack.c.l.b16 %v917
    %v986 = vunpack.c.l.b16 %v918
    %v987 = vunpack.c.l.b16 %v919
    %v988 = vunpack.c.l.b16 %v920
    %v989 = vunpack.c.l.b16 %v921
    %v990 = vunpack.c.l.b16 %v922
    %v991 = vunpack.c.l.b16 %v923
    %v992 = vunpack.c.l.b16 %v924
    %v993 = vunpack.c.l.b16 %v925
    %v994 = vunpack.c.l.b16 %v926
    %v995 = vunpack.c.l.b16 %v927
    %v996 = vunpack.c.l.b16 %v928
    %v997 = vunpack.c.l.b16 %v929
    %v998 = vunpack.c.l.b16 %v930
    %v999 = vunpack.c.l.b16 %v931
    %v1000 = vunpack.c.l.b16 %v932
    %v1001 = vunpack.c.l.b16 %v933
    %v1002 = vunpack.c.l.b16 %v934
    %v1003 = vunpack.c.l.b16 %v935
    %v1004 = vunpack.c.l.b16 %v936
    %v1005 = vunpack.c.l.b16 %v937
    %v1006 = vunpack.c.l.b16 %v938
    %v1007 = vunpack.c.l.b16 %v939
    %v1008 = vunpack.c.l.b16 %v940
    %v1009 = vunpack.c.l.b16 %v941
    %v1010 = vunpack.c.l.b16 %v942
    %v1011 = vunpack.c.l.b16 %v943
    %v1012 = vunpack.c.l.b16 %v944
    %v1013 = vunpack.c.l.b16 %v945
    %v1014 = vpack.c.b16 %v983, %v982
    %v1015 = vpack.c.b16 %v985, %v984
    %v1016 = vpack.c.b16 %v987, %v986
    %v1017 = vpack.c.b16 %v989, %v988
    %v1018 = vpack.c.b16 %v991, %v990
    %v1019 = vpack.c.b16 %v993, %v992
    %v1020 = vpack.c.b16 %v995, %v994
    %v1021 = vpack.c.b16 %v997, %v996
    %v1022 = vpack.c.b16 %v999, %v998
    %v1023 = vpack.c.b16 %v1001, %v1000
    %v1024 = vpack.c.b16 %v1003, %v1002
    %v1025 = vpack.c.b16 %v1005, %v1004
    %v1026 = vpack.c.b16 %v1007, %v1006
    %v1027 = vpack.c.b16 %v1009, %v1008
    %v1028 = vpack.c.b16 %v1011, %v1010
    %v1029 = vpack.c.b16 %v1013, %v1012
    %1046 = vmatpush.bf16.msra.mxu0 %v1021
    %1047 = vmatpush.bf16.msra.mxu0 %v1020
    %1048 = vmatpush.bf16.msra.mxu0 %v1019
    %1049 = vmatpush.bf16.msra.mxu0 %v1018
    %1050 = vmatpush.bf16.msra.mxu0 %v1017
    %1051 = vmatpush.bf16.msra.mxu0 %v1016
    %1052 = vmatpush.bf16.msra.mxu0 %v1015
    %1053 = vmatpush.bf16.msra.mxu0 %v1014
    %1054 = vmatmul.bf16.gmra.mxu0 %v912
    %v1055 = vpop.f32.mrf.mxu0
    %v1056 = vadd.f32 %v948, %v1055
    %v1057 = vpop.f32.mrf.mxu0
    %1058 = vdwg.mxu0
    %1059 = vmatpush.bf16.msra.mxu0 %v1029
    %1060 = vmatpush.bf16.msra.mxu0 %v1028
    %1061 = vmatpush.bf16.msra.mxu0 %v1027
    %1062 = vmatpush.bf16.msra.mxu0 %v1026
    %1063 = vmatpush.bf16.msra.mxu0 %v1025
    %1064 = vmatpush.bf16.msra.mxu0 %v1024
    %1065 = vmatpush.bf16.msra.mxu0 %v1023
    %1066 = vmatpush.bf16.msra.mxu0 %v1022
    %1067 = vmatmul.bf16.gmra.mxu0 %v913
    %v1068 = vpop.f32.mrf.mxu0
    %v1069 = vadd.f32 %v1056, %v1068
    %v1070 = vpop.f32.mrf.mxu0
    %1071 = vdwg.mxu0
    %v1072 = vtanh.pop %v1069
    %v1073 = vpack.c.bf16 %v1072, %v1072
    %v1074 = vld [vmem:[%s4 + $0x80] sm:$0xf]
    %v1075 = vld [vmem:[%s4 + $0x84] sm:$0xf]
    %v1076 = vld [vmem:[%s4 + $0x88] sm:$0xf]
    %v1077 = vld [vmem:[%s4 + $0x8c] sm:$0xf]
    %v1078 = vld [vmem:[%s4 + $0x90] sm:$0xf]
    %v1079 = vld [vmem:[%s4 + $0x94] sm:$0xf]
    %v1080 = vld [vmem:[%s4 + $0x98] sm:$0xf]
    %v1081 = vld [vmem:[%s4 + $0x9c] sm:$0xf]
    %v1082 = vld [vmem:[%s5 + $0x9] sm:$0x1]
    %v1084 = vperm.slane %v1082, 0
    %v1094 = vunpack.c.l.b16 %v1074
    %v1095 = vunpack.c.l.b16 %v1075
    %v1096 = vunpack.c.l.b16 %v1076
    %v1097 = vunpack.c.l.b16 %v1077
    %v1098 = vunpack.c.l.b16 %v1078
    %v1099 = vunpack.c.l.b16 %v1079
    %v1100 = vunpack.c.l.b16 %v1080
    %v1101 = vunpack.c.l.b16 %v1081
    %v1102 = vpack.c.b16 %v1095, %v1094
    %v1103 = vpack.c.b16 %v1097, %v1096
    %v1104 = vpack.c.b16 %v1099, %v1098
    %v1105 = vpack.c.b16 %v1101, %v1100
    %vm1110 = vcmask 523264
    %v1112 = vsel %vm1110, %v1073, 0
    %1114 = vmatpush.bf16.msra.mxu0 0
    %1115 = vmatpush.bf16.msra.mxu0 0
    %1116 = vmatpush.bf16.msra.mxu0 0
    %1117 = vmatpush.bf16.msra.mxu0 0
    %1118 = vmatpush.bf16.msra.mxu0 %v1105
    %1119 = vmatpush.bf16.msra.mxu0 %v1104
    %1120 = vmatpush.bf16.msra.mxu0 %v1103
    %1121 = vmatpush.bf16.msra.mxu0 %v1102
    %1122 = vmatmul.bf16.gmra.mxu0 %v1112
    %v1123 = vpop.f32.mrf.mxu0
    %v1124 = vadd.f32 %v1084, %v1123
    %v1125 = vpop.f32.mrf.mxu0
    %1126 = vdwg.mxu0
    %v1127 = vtanh.pop %v1124
    %v1128 = vpack.c.bf16 %v1127, %v1127
    %v1129 = vld [vmem:[%s4 + $0xa0] sm:$0xf]
    %v1130 = vld [vmem:[%s4 + $0xa4] sm:$0xf]
    %v1131 = vld [vmem:[%s4 + $0xa8] sm:$0xf]
    %v1132 = vld [vmem:[%s4 + $0xac] sm:$0xf]
    %v1133 = vld [vmem:[%s4 + $0xb0] sm:$0xf]
    %v1134 = vld [vmem:[%s4 + $0xb4] sm:$0xf]
    %v1135 = vld [vmem:[%s4 + $0xb8] sm:$0xf]
    %v1136 = vld [vmem:[%s4 + $0xbc] sm:$0xf]
    %v1137 = vld [vmem:[%s5 + $0xa] sm:$0x1]
    %v1139 = vperm.slane %v1137, 0
    %v1149 = vunpack.c.l.b16 %v1129
    %v1150 = vunpack.c.l.b16 %v1130
    %v1151 = vunpack.c.l.b16 %v1131
    %v1152 = vunpack.c.l.b16 %v1132
    %v1153 = vunpack.c.l.b16 %v1133
    %v1154 = vunpack.c.l.b16 %v1134
    %v1155 = vunpack.c.l.b16 %v1135
    %v1156 = vunpack.c.l.b16 %v1136
    %v1157 = vpack.c.b16 %v1150, %v1149
    %v1158 = vpack.c.b16 %v1152, %v1151
    %v1159 = vpack.c.b16 %v1154, %v1153
    %v1160 = vpack.c.b16 %v1156, %v1155
    %v1166 = vsel %vm1110, %v1128, 0
    %1168 = vmatpush.bf16.msra.mxu0 0
    %1169 = vmatpush.bf16.msra.mxu0 0
    %1170 = vmatpush.bf16.msra.mxu0 0
    %1171 = vmatpush.bf16.msra.mxu0 0
    %1172 = vmatpush.bf16.msra.mxu0 %v1160
    %1173 = vmatpush.bf16.msra.mxu0 %v1159
    %1174 = vmatpush.bf16.msra.mxu0 %v1158
    %1175 = vmatpush.bf16.msra.mxu0 %v1157
    %1176 = vmatmul.bf16.gmra.mxu0 %v1166
    %v1177 = vpop.f32.mrf.mxu0
    %v1178 = vadd.f32 %v1139, %v1177
    %v1179 = vpop.f32.mrf.mxu0
    %1180 = vdwg.mxu0
    %vm1181 = vcmask 64512
    %v1182 = vsel %vm1181, %v1178, -inf
    %1183 = vmax.xlane.f32.xlu0 %v1182
    %v1184 = vpop.xlane.xlu0 %1183
    %v1185 = vsub.f32 %v1178, %v1184
    %v1186 = vmul.f32 %v1185, 1.442695
    %v1187 = vpow.pop %v1186
    %v1188 = vsel %vm1181, %v1187, 0.0
    %1189 = vadd.xlane.f32.xlu0 %v1188
    %v1190 = vpop.xlane.xlu0 %1189
    %v1191 = vrcp.pop %v1190
    %v1192 = vmul.f32 %v1190, %v1191
    %v1193 = vsub.f32 1.0, %v1192
    %v1194 = vmul.f32 %v1191, %v1193
    %v1195 = vadd.f32 %v1191, %v1194
    %vm1196 = vweird.f32 %v1190
    %vm1197 = vweird.f32 %v1191
    %vm1198 = vmor %vm1196, %vm1197
    %v1199 = vsel %vm1198, %v1191, %v1195
    %v1200 = vand.u32 2147483647, %v1190
    %vm1201 = vcmp.eq.f32.partialorder %v1200, 8.507059e+37
    %v1202 = vand.u32 %v1190, 2147483648
    %v1203 = vor.u32 1.1754944e-38, %v1202
    %v1204 = vsel %vm1201, %v1203, %v1199
    %v1205 = vmul.f32 %v1187, %v1204
    %v1206 = vlog2.pop %v1190
    %v1207 = vmul.f32 %v1206, 0.6931472
    %v1208 = vsub.f32 %v1185, %v1207
    %1210 = vrot.lane.b32.xlu0 %v56, 96
    %v1211 = vpop.permute.xlu0 %1210
    %vm1213 = vcmp.lt.f32.partialorder %v1205, %v1211
    %v1214 = vsel %vm1213, 1, 0
    %1216 = vrot.lane.b32.xlu0 %v1205, 127
    %v1217 = vpop.permute.xlu0 %1216
    %v1219 = vadd.f32 %v1205, %v1217
    %vm1220 = vcmp.lt.f32.partialorder %v1219, %v1211
    %v1221 = vsel %vm1220, 1, 0
    %v1222 = vadd.s32 %v1214, %v1221
    %1223 = vrot.lane.b32.xlu0 %v1205, 126
    %v1224 = vpop.permute.xlu0 %1223
    %v1226 = vadd.f32 %v1219, %v1224
    %vm1227 = vcmp.lt.f32.partialorder %v1226, %v1211
    %v1228 = vsel %vm1227, 1, 0
    %v1229 = vadd.s32 %v1222, %v1228
    %1230 = vrot.lane.b32.xlu0 %v1205, 125
    %v1231 = vpop.permute.xlu0 %1230
    %v1233 = vadd.f32 %v1226, %v1231
    %vm1234 = vcmp.lt.f32.partialorder %v1233, %v1211
    %v1235 = vsel %vm1234, 1, 0
    %v1236 = vadd.s32 %v1229, %v1235
    %1237 = vrot.lane.b32.xlu0 %v1205, 124
    %v1238 = vpop.permute.xlu0 %1237
    %v1240 = vadd.f32 %v1233, %v1238
    %vm1241 = vcmp.lt.f32.partialorder %v1240, %v1211
    %v1242 = vsel %vm1241, 1, 0
    %v1243 = vadd.s32 %v1236, %v1242
    %1244 = vrot.lane.b32.xlu0 %v1205, 123
    %v1245 = vpop.permute.xlu0 %1244
    %v1247 = vadd.f32 %v1240, %v1245
    %vm1248 = vcmp.lt.f32.partialorder %v1247, %v1211
    %v1249 = vsel %vm1248, 1, 0
    %v1250 = vadd.s32 %v1243, %v1249
    %1251 = vrot.lane.b32.xlu0 %v1205, 122
    %v1252 = vpop.permute.xlu0 %1251
    %v1254 = vadd.f32 %v1247, %v1252
    %vm1255 = vcmp.lt.f32.partialorder %v1254, %v1211
    %v1256 = vsel %vm1255, 1, 0
    %v1257 = vadd.s32 %v1250, %v1256
    %v1258 = vlaneseq
    %v1259 = vand.u32 %v1258, 127
    %1260 = vset.pattern.permute.xlu0 0
    %1261 = vperm.xlu0 %1260, %v1257
    %v1262 = vpop.permute.xlu0 %1261
    %vm1263 = vcmp.eq.s32.totalorder %v1259, %v1262
    %v1264 = vsel %vm1263, 1, 0
    %v1265 = vcvt.s32.f32 %v1264
    %v1266 = vmul.f32 %v1208, %v1265
    %v1267 = vsel %vm1181, %v1266, 0.0
    %1268 = vadd.xlane.f32.xlu0 %v1267
    %v1269 = vpop.xlane.xlu0 %1268
    %v1270 = vmul.f32 %v1205, %v1208
    %v1271 = vsel %vm1181, %v1270, 0.0
    %1272 = vadd.xlane.f32.xlu0 %v1271
    %v1273 = vpop.xlane.xlu0 %1272
    %v1274 = vsub.f32 0.0, %v1273
    %v1275 = vld [vmem:[%s4 + $0xc0] sm:$0xf]
    %v1276 = vld [vmem:[%s4 + $0xc4] sm:$0xf]
    %v1277 = vld [vmem:[%s4 + $0xc8] sm:$0xf]
    %v1278 = vld [vmem:[%s4 + $0xcc] sm:$0xf]
    %v1279 = vld [vmem:[%s4 + $0xd0] sm:$0xf]
    %v1280 = vld [vmem:[%s4 + $0xd4] sm:$0xf]
    %v1281 = vld [vmem:[%s4 + $0xd8] sm:$0xf]
    %v1282 = vld [vmem:[%s4 + $0xdc] sm:$0xf]
    %v1283 = vld [vmem:[%s4 + $0xe0] sm:$0xf]
    %v1284 = vld [vmem:[%s4 + $0xe4] sm:$0xf]
    %v1285 = vld [vmem:[%s4 + $0xe8] sm:$0xf]
    %v1286 = vld [vmem:[%s4 + $0xec] sm:$0xf]
    %v1287 = vld [vmem:[%s4 + $0xf0] sm:$0xf]
    %v1288 = vld [vmem:[%s4 + $0xf4] sm:$0xf]
    %v1289 = vld [vmem:[%s4 + $0xf8] sm:$0xf]
    %v1290 = vld [vmem:[%s4 + $0xfc] sm:$0xf]
    %v1291 = vld [vmem:[%s4 + $0x100] sm:$0xf]
    %v1292 = vld [vmem:[%s4 + $0x104] sm:$0xf]
    %v1293 = vld [vmem:[%s4 + $0x108] sm:$0xf]
    %v1294 = vld [vmem:[%s4 + $0x10c] sm:$0xf]
    %v1295 = vld [vmem:[%s4 + $0x110] sm:$0xf]
    %v1296 = vld [vmem:[%s4 + $0x114] sm:$0xf]
    %v1297 = vld [vmem:[%s4 + $0x118] sm:$0xf]
    %v1298 = vld [vmem:[%s4 + $0x11c] sm:$0xf]
    %v1299 = vld [vmem:[%s4 + $0x120] sm:$0xf]
    %v1300 = vld [vmem:[%s4 + $0x124] sm:$0xf]
    %v1301 = vld [vmem:[%s4 + $0x128] sm:$0xf]
    %v1302 = vld [vmem:[%s4 + $0x12c] sm:$0xf]
    %v1303 = vld [vmem:[%s4 + $0x130] sm:$0xf]
    %v1304 = vld [vmem:[%s4 + $0x134] sm:$0xf]
    %v1305 = vld [vmem:[%s4 + $0x138] sm:$0xf]
    %v1306 = vld [vmem:[%s4 + $0x13c] sm:$0xf]
    %v1307 = vpack.c.bf16 %v1265, %v1265
    %v1308 = vld [vmem:[%s4 + $0x140] sm:$0xf]
    %v1309 = vld [vmem:[%s4 + $0x144] sm:$0xf]
    %v1312 = vunpack.c.l.b16 %v1308
    %v1313 = vunpack.c.l.b16 %v1309
    %v1314 = vpack.c.b16 %v1313, %v1312
    %vm1316 = vcmask 130048
    %v1318 = vsel %vm1316, %v1307, 0
    %1320 = vmatpush.bf16.msra.mxu0 0
    %1321 = vmatpush.bf16.msra.mxu0 0
    %1322 = vmatpush.bf16.msra.mxu0 0
    %1323 = vmatpush.bf16.msra.mxu0 0
    %1324 = vmatpush.bf16.msra.mxu0 0
    %1325 = vmatpush.bf16.msra.mxu0 0
    %1326 = vmatpush.bf16.msra.mxu0 0
    %1327 = vmatpush.bf16.msra.mxu0 %v1314
    %1328 = vmatmul.bf16.gmra.mxu0 %v1318
    %v1329 = vpop.f32.mrf.mxu0
    %v1330 = vadd.f32 0.0, %v1329
    %v1331 = vpop.f32.mrf.mxu0
    %1332 = vdwg.mxu0
    %v1365 = vunpack.c.l.b16 %v1275
    %v1366 = vunpack.c.l.b16 %v1276
    %v1367 = vunpack.c.l.b16 %v1277
    %v1368 = vunpack.c.l.b16 %v1278
    %v1369 = vunpack.c.l.b16 %v1279
    %v1370 = vunpack.c.l.b16 %v1280
    %v1371 = vunpack.c.l.b16 %v1281
    %v1372 = vunpack.c.l.b16 %v1282
    %v1373 = vunpack.c.l.b16 %v1283
    %v1374 = vunpack.c.l.b16 %v1284
    %v1375 = vunpack.c.l.b16 %v1285
    %v1376 = vunpack.c.l.b16 %v1286
    %v1377 = vunpack.c.l.b16 %v1287
    %v1378 = vunpack.c.l.b16 %v1288
    %v1379 = vunpack.c.l.b16 %v1289
    %v1380 = vunpack.c.l.b16 %v1290
    %v1381 = vunpack.c.l.b16 %v1291
    %v1382 = vunpack.c.l.b16 %v1292
    %v1383 = vunpack.c.l.b16 %v1293
    %v1384 = vunpack.c.l.b16 %v1294
    %v1385 = vunpack.c.l.b16 %v1295
    %v1386 = vunpack.c.l.b16 %v1296
    %v1387 = vunpack.c.l.b16 %v1297
    %v1388 = vunpack.c.l.b16 %v1298
    %v1389 = vunpack.c.l.b16 %v1299
    %v1390 = vunpack.c.l.b16 %v1300
    %v1391 = vunpack.c.l.b16 %v1301
    %v1392 = vunpack.c.l.b16 %v1302
    %v1393 = vunpack.c.l.b16 %v1303
    %v1394 = vunpack.c.l.b16 %v1304
    %v1395 = vunpack.c.l.b16 %v1305
    %v1396 = vunpack.c.l.b16 %v1306
    %v1397 = vpack.c.b16 %v1366, %v1365
    %v1398 = vpack.c.b16 %v1368, %v1367
    %v1399 = vpack.c.b16 %v1370, %v1369
    %v1400 = vpack.c.b16 %v1372, %v1371
    %v1401 = vpack.c.b16 %v1374, %v1373
    %v1402 = vpack.c.b16 %v1376, %v1375
    %v1403 = vpack.c.b16 %v1378, %v1377
    %v1404 = vpack.c.b16 %v1380, %v1379
    %v1405 = vpack.c.b16 %v1382, %v1381
    %v1406 = vpack.c.b16 %v1384, %v1383
    %v1407 = vpack.c.b16 %v1386, %v1385
    %v1408 = vpack.c.b16 %v1388, %v1387
    %v1409 = vpack.c.b16 %v1390, %v1389
    %v1410 = vpack.c.b16 %v1392, %v1391
    %v1411 = vpack.c.b16 %v1394, %v1393
    %v1412 = vpack.c.b16 %v1396, %v1395
    %1429 = vmatpush.bf16.msra.mxu0 %v1404
    %1430 = vmatpush.bf16.msra.mxu0 %v1403
    %1431 = vmatpush.bf16.msra.mxu0 %v1402
    %1432 = vmatpush.bf16.msra.mxu0 %v1401
    %1433 = vmatpush.bf16.msra.mxu0 %v1400
    %1434 = vmatpush.bf16.msra.mxu0 %v1399
    %1435 = vmatpush.bf16.msra.mxu0 %v1398
    %1436 = vmatpush.bf16.msra.mxu0 %v1397
    %1437 = vmatmul.bf16.gmra.mxu0 %v912
    %v1438 = vpop.f32.mrf.mxu0
    %v1439 = vadd.f32 %v1330, %v1438
    %v1440 = vpop.f32.mrf.mxu0
    %1441 = vdwg.mxu0
    %1442 = vmatpush.bf16.msra.mxu0 %v1412
    %1443 = vmatpush.bf16.msra.mxu0 %v1411
    %1444 = vmatpush.bf16.msra.mxu0 %v1410
    %1445 = vmatpush.bf16.msra.mxu0 %v1409
    %1446 = vmatpush.bf16.msra.mxu0 %v1408
    %1447 = vmatpush.bf16.msra.mxu0 %v1407
    %1448 = vmatpush.bf16.msra.mxu0 %v1406
    %1449 = vmatpush.bf16.msra.mxu0 %v1405
    %1450 = vmatmul.bf16.gmra.mxu0 %v913
    %v1451 = vpop.f32.mrf.mxu0
    %v1452 = vadd.f32 %v1439, %v1451
    %v1453 = vpop.f32.mrf.mxu0
    %1454 = vdwg.mxu0
    %v1455 = vld [vmem:[%s5 + $0xb] sm:$0x1]
    %v1457 = vperm.slane %v1455, 0
    %v1459 = vadd.f32 %v1452, %v1457
    %v1460 = vtanh.pop %v1459
    %v1461 = vpack.c.bf16 %v1460, %v1460
    %v1462 = vld [vmem:[%s4 + $0x148] sm:$0xf]
    %v1463 = vld [vmem:[%s4 + $0x14c] sm:$0xf]
    %v1464 = vld [vmem:[%s4 + $0x150] sm:$0xf]
    %v1465 = vld [vmem:[%s4 + $0x154] sm:$0xf]
    %v1466 = vld [vmem:[%s4 + $0x158] sm:$0xf]
    %v1467 = vld [vmem:[%s4 + $0x15c] sm:$0xf]
    %v1468 = vld [vmem:[%s4 + $0x160] sm:$0xf]
    %v1469 = vld [vmem:[%s4 + $0x164] sm:$0xf]
    %v1470 = vld [vmem:[%s5 + $0xc] sm:$0x1]
    %v1472 = vperm.slane %v1470, 0
    %v1482 = vunpack.c.l.b16 %v1462
    %v1483 = vunpack.c.l.b16 %v1463
    %v1484 = vunpack.c.l.b16 %v1464
    %v1485 = vunpack.c.l.b16 %v1465
    %v1486 = vunpack.c.l.b16 %v1466
    %v1487 = vunpack.c.l.b16 %v1467
    %v1488 = vunpack.c.l.b16 %v1468
    %v1489 = vunpack.c.l.b16 %v1469
    %v1490 = vpack.c.b16 %v1483, %v1482
    %v1491 = vpack.c.b16 %v1485, %v1484
    %v1492 = vpack.c.b16 %v1487, %v1486
    %v1493 = vpack.c.b16 %v1489, %v1488
    %v1499 = vsel %vm1110, %v1461, 0
    %1501 = vmatpush.bf16.msra.mxu0 0
    %1502 = vmatpush.bf16.msra.mxu0 0
    %1503 = vmatpush.bf16.msra.mxu0 0
    %1504 = vmatpush.bf16.msra.mxu0 0
    %1505 = vmatpush.bf16.msra.mxu0 %v1493
    %1506 = vmatpush.bf16.msra.mxu0 %v1492
    %1507 = vmatpush.bf16.msra.mxu0 %v1491
    %1508 = vmatpush.bf16.msra.mxu0 %v1490
    %1509 = vmatmul.bf16.gmra.mxu0 %v1499
    %v1510 = vpop.f32.mrf.mxu0
    %v1511 = vadd.f32 %v1472, %v1510
    %v1512 = vpop.f32.mrf.mxu0
    %1513 = vdwg.mxu0
    %v1514 = vtanh.pop %v1511
    %v1515 = vpack.c.bf16 %v1514, %v1514
    %v1516 = vld [vmem:[%s4 + $0x168] sm:$0xf]
    %v1517 = vld [vmem:[%s4 + $0x16c] sm:$0xf]
    %v1518 = vld [vmem:[%s4 + $0x170] sm:$0xf]
    %v1519 = vld [vmem:[%s4 + $0x174] sm:$0xf]
    %v1520 = vld [vmem:[%s4 + $0x178] sm:$0xf]
    %v1521 = vld [vmem:[%s4 + $0x17c] sm:$0xf]
    %v1522 = vld [vmem:[%s4 + $0x180] sm:$0xf]
    %v1523 = vld [vmem:[%s4 + $0x184] sm:$0xf]
    %v1524 = vld [vmem:[%s5 + $0xd] sm:$0x1]
    %v1526 = vperm.slane %v1524, 0
    %v1536 = vunpack.c.l.b16 %v1516
    %v1537 = vunpack.c.l.b16 %v1517
    %v1538 = vunpack.c.l.b16 %v1518
    %v1539 = vunpack.c.l.b16 %v1519
    %v1540 = vunpack.c.l.b16 %v1520
    %v1541 = vunpack.c.l.b16 %v1521
    %v1542 = vunpack.c.l.b16 %v1522
    %v1543 = vunpack.c.l.b16 %v1523
    %v1544 = vpack.c.b16 %v1537, %v1536
    %v1545 = vpack.c.b16 %v1539, %v1538
    %v1546 = vpack.c.b16 %v1541, %v1540
    %v1547 = vpack.c.b16 %v1543, %v1542
    %v1553 = vsel %vm1110, %v1515, 0
    %1555 = vmatpush.bf16.msra.mxu0 0
    %1556 = vmatpush.bf16.msra.mxu0 0
    %1557 = vmatpush.bf16.msra.mxu0 0
    %1558 = vmatpush.bf16.msra.mxu0 0
    %1559 = vmatpush.bf16.msra.mxu0 %v1547
    %1560 = vmatpush.bf16.msra.mxu0 %v1546
    %1561 = vmatpush.bf16.msra.mxu0 %v1545
    %1562 = vmatpush.bf16.msra.mxu0 %v1544
    %1563 = vmatmul.bf16.gmra.mxu0 %v1553
    %v1564 = vpop.f32.mrf.mxu0
    %v1565 = vadd.f32 %v1526, %v1564
    %v1566 = vpop.f32.mrf.mxu0
    %1567 = vdwg.mxu0
    %v1568 = vcvt.s32.f32 %v1257
    %1570 = vrot.lane.b32.xlu0 %v1568, 8
    %v1571 = vpop.permute.xlu0 %1570
    %1574 = vrot.lane.b32.xlu0 %v1178, 3
    %v1575 = vpop.permute.xlu0 %1574
    %1578 = vrot.lane.b32.xlu0 %v1565, 16
    %v1579 = vpop.permute.xlu0 %1578
    %v1581 = vsel %vm1181, %v1205, %v1571
    %vm1582 = vcmask 72704
    %v1583 = vsel %vm1582, %v1581, %v1269
    %vm1584 = vcmask 80896
    %v1585 = vsel %vm1584, %v1583, %v1274
    %vm1586 = vcmask 89088
    %v1587 = vsel %vm1586, %v1585, %v1575
    %vm1588 = vcmask 97280
    %v1589 = vsel %vm1588, %v1587, 0.0
    %v1590 = vsel %vm1316, %v1589, %v1579
    %vm1591 = vcmask 654336
    %v1592 = vsel %vm1591, %v1590, 0.0
    %1593 = vst [vmem:[#allocation5] sm:$0xff] %v1592
    // Predicated region
    $region34: #{_run_rollout_kernel.1} parent=1 // pred_check
      _
    $region35: #{_run_rollout_kernel.1} parent=1 // pred_check_branch
      %1595 = sbr.rel (0) target = $region37
    $region36: #{_run_rollout_kernel.1} parent=1 // pred_region
      %1597 = vsyncadd [#allocation4], 0
      %s1599 = sshll.u32 [#allocation5], 4
      %s1600 = int_to_ptr.vmem [resolvable:$true] %s1599
      %s1601 = sshll.u32 %s6, 4
      %s1602 = int_to_ptr.hbm [resolvable:$true] %s1601
      %1604 = dma.vmem_to_hbm [thread:$0]  %s1600, 128, %s1602, [#allocation4]
    $region37: #{_run_rollout_kernel.1} parent=1 // pred_fallthru
      _
    // Predicated region
    $region38: #{_run_rollout_kernel.1} parent=1 // pred_check
      _
    $region39: #{_run_rollout_kernel.1} parent=1 // pred_check_branch
      %1606 = sbr.rel (0) target = $region41
    $region40: #{_run_rollout_kernel.1} parent=1 // pred_region
      %1608 = vsyncadd [#allocation7], 0
      %s1610 = sshll.u32 [#allocation6], 4
      %s1611 = int_to_ptr.vmem [resolvable:$true] %s1610
      %s1612 = sshll.u32 %s7, 4
      %s1613 = int_to_ptr.hbm [resolvable:$true] %s1612
      %1615 = dma.vmem_to_hbm [thread:$0]  %s1611, 512, %s1613, [#allocation7]
    $region41: #{_run_rollout_kernel.1} parent=1 // pred_fallthru
      _
    // Predicated region
    $region42: #{_run_rollout_kernel.1} parent=1 // pred_check
      _
    $region43: #{_run_rollout_kernel.1} parent=1 // pred_check_branch
      %1617 = sbr.rel (0) target = $region45
    $region44: #{_run_rollout_kernel.1} parent=1 // pred_region
      %1619 = dma.done [#allocation4], 128
    $region45: #{_run_rollout_kernel.1} parent=1 // pred_fallthru
      _
    // Predicated region
    $region46: #{_run_rollout_kernel.1} parent=1 // pred_check
      _
    $region47: #{_run_rollout_kernel.1} parent=1 // pred_check_branch
      %1621 = sbr.rel (0) target = $region49
    $region48: #{_run_rollout_kernel.1} parent=1 // pred_region
      %1623 = dma.done [#allocation7], 512
    $region49: #{_run_rollout_kernel.1} parent=1 // pred_fallthru
      _
    %1624 = vsyncpa [#allocation3], 1
    %1625 = vsyncpa [#allocation4], 1
    %1626 = vsyncpa [#allocation7], 1

</llo_original>
